<compile_context>
chip_gen: v7x
topology: tpu7x:2x2x1
jax: 0.10.0
libtpu: 0.0.40
codegen_flags: <defaults>
</compile_context>

<pallas_src>
import math

import jax
import jax.numpy as jnp
from jax.experimental import pallas as pl
from jax.experimental.pallas import tpu as pltpu


def _dwconv_kernel(x_ref, w_ref, b_ref, o_ref, *, H, W):
    # x_ref: (1, H+2, W+2, Ct)  zero-padded channels-last input tile
    # w_ref: (9, Ct)            depthwise taps, row k = (ki, kj) = (k // 3, k % 3)
    # b_ref: (1, Ct)            bias
    # o_ref: (1, H, W, Ct)
    ct = o_ref.shape[-1]
    x = x_ref[...]
    # init accumulator with the bias (broadcast once, outside the tap loop)
    acc = jnp.broadcast_to(
        b_ref[...].astype(jnp.float32).reshape(1, 1, 1, ct), (1, H, W, ct))
    # 3x3 depthwise conv = 9 shifted multiply-accumulates on the VPU
    for ki in range(3):
        for kj in range(3):
            tap = w_ref[ki * 3 + kj, :].astype(jnp.float32)        # (Ct,) lane vec
            acc = acc + x[:, ki:ki + H, kj:kj + W, :].astype(jnp.float32) * tap
    o_ref[...] = acc.astype(o_ref.dtype)


def dwconv(x, w, b, H, W):
    """Pallas DWConv forward.

    x: (B, N, C) with N == H*W   (token layout, channels last)
    w: (C, 1, 3, 3)              (PyTorch depthwise Conv2d weight, OIHW)
    b: (C,)
    Returns (B, N, C), matching DWConv.forward(x, H, W).
    """
    B, N, C = x.shape
    assert N == H * W
    assert w.shape == (C, 1, 3, 3)

    # channels-last image view + one-time zero padding (padding=1)
    x_img = x.reshape(B, H, W, C)
    xp = jnp.pad(x_img, ((0, 0), (1, 1), (1, 1), (0, 0))).astype(jnp.float32)

    # (C, 1, 3, 3) -> (9, C): row k = tap (k // 3, k % 3), channels on lanes
    w9 = jnp.transpose(w.reshape(C, 9), (1, 0)).astype(jnp.float32)
    b2 = b.reshape(1, C).astype(jnp.float32)

    # lane-dense channel tiles when possible; otherwise take the full channel dim
    c_tile = 128 if C % 128 == 0 else C
    n_ct = C // c_tile

    cost = pl.CostEstimate(
        flops=2 * B * H * W * C * 9,
        transcendentals=0,
        bytes_accessed=(xp.size + w9.size + b2.size + B * H * W * C) * 4)

    out = pl.pallas_call(
        lambda xr, wr, br, orf: _dwconv_kernel(xr, wr, br, orf, H=H, W=W),
        out_shape=jax.ShapeDtypeStruct((B, H, W, C), jnp.float32),
        grid=(B, n_ct),
        in_specs=[
            pl.BlockSpec((1, H + 2, W + 2, c_tile), lambda bi, ci: (bi, 0, 0, ci)),
            pl.BlockSpec((9, c_tile), lambda bi, ci: (0, ci)),
            pl.BlockSpec((1, c_tile), lambda bi, ci: (0, ci)),
        ],
        out_specs=pl.BlockSpec((1, H, W, c_tile), lambda bi, ci: (bi, 0, 0, ci)),
        compiler_params=pltpu.CompilerParams(
            dimension_semantics=("parallel", "parallel")),
        cost_estimate=cost,
    )(xp, w9, b2)

    return out.reshape(B, N, C)


def _reference(x, w, b, H, W):
    """Pure-JAX reference: depthwise conv via lax.conv (matches PyTorch)."""
    B, N, C = x.shape
    xi = x.reshape(B, H, W, C).transpose(0, 3, 1, 2).astype(jnp.float32)  # NCHW
    y = jax.lax.conv_general_dilated(
        xi, w.astype(jnp.float32),
        window_strides=(1, 1), padding=((1, 1), (1, 1)),
        dimension_numbers=("NCHW", "OIHW", "NCHW"),
        feature_group_count=C)
    y = y + b.reshape(1, C, 1, 1)
    return y.reshape(B, C, N).transpose(0, 2, 1)   # (B, N, C)


if __name__ == "__main__":
    # Small shapes consistent with the module's forward: batch=2, dim=32 tokens
    # on a 16x16 grid (N = 256).
    B, dim, H, W = 2, 32, 16, 16
    N = H * W

    key = jax.random.PRNGKey(0)
    kx, kw, kb = jax.random.split(key, 3)
    x = jax.random.normal(kx, (B, N, dim), dtype=jnp.float32)

    # Deterministic params (kaiming-style conv init, small bias)
    fan_out = 3 * 3 * dim // dim
    w = jax.random.normal(kw, (dim, 1, 3, 3), dtype=jnp.float32) * math.sqrt(2.0 / fan_out)
    b = jax.random.normal(kb, (dim,), dtype=jnp.float32) * 0.02

    y = dwconv(x, w, b, H, W)
    y = jax.block_until_ready(y)

    y_ref = _reference(x, w, b, H, W)
    assert y.shape == (B, N, dim)
    assert jnp.allclose(y, y_ref, atol=1e-4, rtol=1e-4)

    print("KERNEL_OK")
</pallas_src>

<mosaic_0001>
module attributes {stable_mosaic.version = 11 : i64} {
  func.func @_lambda_(%arg0: i32, %arg1: i32, %arg2: memref<1x18x18x32xf32, #tpu.memory_space<vmem>>, %arg3: memref<9x32xf32, #tpu.memory_space<vmem>>, %arg4: memref<1x32xf32, #tpu.memory_space<vmem>>, %arg5: memref<1x16x16x32xf32, #tpu.memory_space<vmem>>) attributes {dimension_semantics = [#tpu.dimension_semantics<parallel>, #tpu.dimension_semantics<parallel>], iteration_bounds = array<i64: 2, 1>, scalar_prefetch = 0 : i64, scratch_operands = 0 : i64, tpu.core_type = #tpu.core_type<tc>, window_params = [{transform_indices = @transform_0, window_bounds = array<i64: 1, 18, 18, 32>}, {transform_indices = @transform_1, window_bounds = array<i64: 9, 32>}, {transform_indices = @transform_2, window_bounds = array<i64: 1, 32>}, {transform_indices = @transform_3, window_bounds = array<i64: 1, 16, 16, 32>}]} {
    %c0 = arith.constant 0 : index
    %c0_0 = arith.constant 0 : index
    %c0_1 = arith.constant 0 : index
    %c0_2 = arith.constant 0 : index
    %0 = vector.load %arg2[%c0, %c0_0, %c0_1, %c0_2] : memref<1x18x18x32xf32, #tpu.memory_space<vmem>>, vector<1x18x18x32xf32>
    %c0_3 = arith.constant 0 : index
    %c0_4 = arith.constant 0 : index
    %1 = vector.load %arg4[%c0_3, %c0_4] : memref<1x32xf32, #tpu.memory_space<vmem>>, vector<1x32xf32>
    %2 = vector.shape_cast %1 : vector<1x32xf32> to vector<1x1x1x32xf32>
    %3 = vector.shape_cast %2 : vector<1x1x1x32xf32> to vector<1x1x1x32xf32>
    %4 = vector.broadcast %3 : vector<1x1x1x32xf32> to vector<1x16x16x32xf32>
    %c0_5 = arith.constant 0 : index
    %c0_6 = arith.constant 0 : index
    %5 = vector.load %arg3[%c0_5, %c0_6] : memref<9x32xf32, #tpu.memory_space<vmem>>, vector<1x32xf32>
    %6 = vector.shape_cast %5 : vector<1x32xf32> to vector<32xf32>
    %7 = vector.extract_strided_slice %0 {offsets = [0, 0, 0, 0], sizes = [1, 16, 16, 32], strides = [1, 1, 1, 1]} : vector<1x18x18x32xf32> to vector<1x16x16x32xf32>
    %8 = vector.shape_cast %6 : vector<32xf32> to vector<1x1x1x32xf32>
    %9 = vector.broadcast %8 : vector<1x1x1x32xf32> to vector<1x16x16x32xf32>
    %10 = arith.mulf %7, %9 : vector<1x16x16x32xf32>
    %11 = arith.addf %4, %10 : vector<1x16x16x32xf32>
    %c1 = arith.constant 1 : index
    %c0_7 = arith.constant 0 : index
    %12 = vector.load %arg3[%c1, %c0_7] : memref<9x32xf32, #tpu.memory_space<vmem>>, vector<1x32xf32>
    %13 = vector.shape_cast %12 : vector<1x32xf32> to vector<32xf32>
    %14 = vector.extract_strided_slice %0 {offsets = [0, 0, 1, 0], sizes = [1, 16, 16, 32], strides = [1, 1, 1, 1]} : vector<1x18x18x32xf32> to vector<1x16x16x32xf32>
    %15 = vector.shape_cast %13 : vector<32xf32> to vector<1x1x1x32xf32>
    %16 = vector.broadcast %15 : vector<1x1x1x32xf32> to vector<1x16x16x32xf32>
    %17 = arith.mulf %14, %16 : vector<1x16x16x32xf32>
    %18 = arith.addf %11, %17 : vector<1x16x16x32xf32>
    %c2 = arith.constant 2 : index
    %c0_8 = arith.constant 0 : index
    %19 = vector.load %arg3[%c2, %c0_8] : memref<9x32xf32, #tpu.memory_space<vmem>>, vector<1x32xf32>
    %20 = vector.shape_cast %19 : vector<1x32xf32> to vector<32xf32>
    %21 = vector.extract_strided_slice %0 {offsets = [0, 0, 2, 0], sizes = [1, 16, 16, 32], strides = [1, 1, 1, 1]} : vector<1x18x18x32xf32> to vector<1x16x16x32xf32>
    %22 = vector.shape_cast %20 : vector<32xf32> to vector<1x1x1x32xf32>
    %23 = vector.broadcast %22 : vector<1x1x1x32xf32> to vector<1x16x16x32xf32>
    %24 = arith.mulf %21, %23 : vector<1x16x16x32xf32>
    %25 = arith.addf %18, %24 : vector<1x16x16x32xf32>
    %c3 = arith.constant 3 : index
    %c0_9 = arith.constant 0 : index
    %26 = vector.load %arg3[%c3, %c0_9] : memref<9x32xf32, #tpu.memory_space<vmem>>, vector<1x32xf32>
    %27 = vector.shape_cast %26 : vector<1x32xf32> to vector<32xf32>
    %28 = vector.extract_strided_slice %0 {offsets = [0, 1, 0, 0], sizes = [1, 16, 16, 32], strides = [1, 1, 1, 1]} : vector<1x18x18x32xf32> to vector<1x16x16x32xf32>
    %29 = vector.shape_cast %27 : vector<32xf32> to vector<1x1x1x32xf32>
    %30 = vector.broadcast %29 : vector<1x1x1x32xf32> to vector<1x16x16x32xf32>
    %31 = arith.mulf %28, %30 : vector<1x16x16x32xf32>
    %32 = arith.addf %25, %31 : vector<1x16x16x32xf32>
    %c4 = arith.constant 4 : index
    %c0_10 = arith.constant 0 : index
    %33 = vector.load %arg3[%c4, %c0_10] : memref<9x32xf32, #tpu.memory_space<vmem>>, vector<1x32xf32>
    %34 = vector.shape_cast %33 : vector<1x32xf32> to vector<32xf32>
    %35 = vector.extract_strided_slice %0 {offsets = [0, 1, 1, 0], sizes = [1, 16, 16, 32], strides = [1, 1, 1, 1]} : vector<1x18x18x32xf32> to vector<1x16x16x32xf32>
    %36 = vector.shape_cast %34 : vector<32xf32> to vector<1x1x1x32xf32>
    %37 = vector.broadcast %36 : vector<1x1x1x32xf32> to vector<1x16x16x32xf32>
    %38 = arith.mulf %35, %37 : vector<1x16x16x32xf32>
    %39 = arith.addf %32, %38 : vector<1x16x16x32xf32>
    %c5 = arith.constant 5 : index
    %c0_11 = arith.constant 0 : index
    %40 = vector.load %arg3[%c5, %c0_11] : memref<9x32xf32, #tpu.memory_space<vmem>>, vector<1x32xf32>
    %41 = vector.shape_cast %40 : vector<1x32xf32> to vector<32xf32>
    %42 = vector.extract_strided_slice %0 {offsets = [0, 1, 2, 0], sizes = [1, 16, 16, 32], strides = [1, 1, 1, 1]} : vector<1x18x18x32xf32> to vector<1x16x16x32xf32>
    %43 = vector.shape_cast %41 : vector<32xf32> to vector<1x1x1x32xf32>
    %44 = vector.broadcast %43 : vector<1x1x1x32xf32> to vector<1x16x16x32xf32>
    %45 = arith.mulf %42, %44 : vector<1x16x16x32xf32>
    %46 = arith.addf %39, %45 : vector<1x16x16x32xf32>
    %c6 = arith.constant 6 : index
    %c0_12 = arith.constant 0 : index
    %47 = vector.load %arg3[%c6, %c0_12] : memref<9x32xf32, #tpu.memory_space<vmem>>, vector<1x32xf32>
    %48 = vector.shape_cast %47 : vector<1x32xf32> to vector<32xf32>
    %49 = vector.extract_strided_slice %0 {offsets = [0, 2, 0, 0], sizes = [1, 16, 16, 32], strides = [1, 1, 1, 1]} : vector<1x18x18x32xf32> to vector<1x16x16x32xf32>
    %50 = vector.shape_cast %48 : vector<32xf32> to vector<1x1x1x32xf32>
    %51 = vector.broadcast %50 : vector<1x1x1x32xf32> to vector<1x16x16x32xf32>
    %52 = arith.mulf %49, %51 : vector<1x16x16x32xf32>
    %53 = arith.addf %46, %52 : vector<1x16x16x32xf32>
    %c7 = arith.constant 7 : index
    %c0_13 = arith.constant 0 : index
    %54 = vector.load %arg3[%c7, %c0_13] : memref<9x32xf32, #tpu.memory_space<vmem>>, vector<1x32xf32>
    %55 = vector.shape_cast %54 : vector<1x32xf32> to vector<32xf32>
    %56 = vector.extract_strided_slice %0 {offsets = [0, 2, 1, 0], sizes = [1, 16, 16, 32], strides = [1, 1, 1, 1]} : vector<1x18x18x32xf32> to vector<1x16x16x32xf32>
    %57 = vector.shape_cast %55 : vector<32xf32> to vector<1x1x1x32xf32>
    %58 = vector.broadcast %57 : vector<1x1x1x32xf32> to vector<1x16x16x32xf32>
    %59 = arith.mulf %56, %58 : vector<1x16x16x32xf32>
    %60 = arith.addf %53, %59 : vector<1x16x16x32xf32>
    %c8 = arith.constant 8 : index
    %c0_14 = arith.constant 0 : index
    %61 = vector.load %arg3[%c8, %c0_14] : memref<9x32xf32, #tpu.memory_space<vmem>>, vector<1x32xf32>
    %62 = vector.shape_cast %61 : vector<1x32xf32> to vector<32xf32>
    %63 = vector.extract_strided_slice %0 {offsets = [0, 2, 2, 0], sizes = [1, 16, 16, 32], strides = [1, 1, 1, 1]} : vector<1x18x18x32xf32> to vector<1x16x16x32xf32>
    %64 = vector.shape_cast %62 : vector<32xf32> to vector<1x1x1x32xf32>
    %65 = vector.broadcast %64 : vector<1x1x1x32xf32> to vector<1x16x16x32xf32>
    %66 = arith.mulf %63, %65 : vector<1x16x16x32xf32>
    %67 = arith.addf %60, %66 : vector<1x16x16x32xf32>
    %c0_15 = arith.constant 0 : index
    %c0_16 = arith.constant 0 : index
    %c0_17 = arith.constant 0 : index
    %c0_18 = arith.constant 0 : index
    %68 = vector.load %arg5[%c0_15, %c0_16, %c0_17, %c0_18] : memref<1x16x16x32xf32, #tpu.memory_space<vmem>>, vector<1x16x16x32xf32>
    tpu.vector_store %arg5[%c0_15, %c0_16, %c0_17, %c0_18], %67 {strides = array<i32>} : memref<1x16x16x32xf32, #tpu.memory_space<vmem>>, vector<1x16x16x32xf32>,
    return
  }
  func.func @transform_0(%arg0: i32, %arg1: i32) -> (i32, i32, i32, i32) {
    %c0_i32 = arith.constant 0 : i32
    %c0_i32_0 = arith.constant 0 : i32
    %c0_i32_1 = arith.constant 0 : i32
    return %arg0, %c0_i32, %c0_i32_0, %arg1 : i32, i32, i32, i32
  }
  func.func @transform_1(%arg0: i32, %arg1: i32) -> (i32, i32) {
    %c0_i32 = arith.constant 0 : i32
    %c0_i32_0 = arith.constant 0 : i32
    return %c0_i32, %arg1 : i32, i32
  }
  func.func @transform_2(%arg0: i32, %arg1: i32) -> (i32, i32) {
    %c0_i32 = arith.constant 0 : i32
    %c0_i32_0 = arith.constant 0 : i32
    return %c0_i32, %arg1 : i32, i32
  }
  func.func @transform_3(%arg0: i32, %arg1: i32) -> (i32, i32, i32, i32) {
    %c0_i32 = arith.constant 0 : i32
    %c0_i32_0 = arith.constant 0 : i32
    %c0_i32_1 = arith.constant 0 : i32
    return %arg0, %c0_i32, %c0_i32_0, %arg1 : i32, i32, i32, i32
  }
}

</mosaic_0001>

<llo_original>
// kernel: tpu_custom_call.1
$region0: #{tpu_custom_call.1}
  #allocation0 [shape = 'u32[]', space=smem, size = 0x4, offset = 0x4, fixed_abs, tag = 'smem constant byte address 0x4 - core index']
  #allocation1 [shape = 'u32[144,128]{1,0:T(1,128)}', space=vmem, size = 0x12000, scoped, tag = 'internal scratch']
  %s0 = inlined_call_operand.vmem [shape: f32[2,18,18,32], index: 0, kind: input, shape index: {}]
  %s1 = inlined_call_operand.vmem [shape: f32[9,32], index: 1, kind: input, shape index: {}]
  %s2 = inlined_call_operand.vmem [shape: f32[1,32], index: 2, kind: input, shape index: {}]
  %s3 = inlined_call_operand.hbm [shape: f32[2,16,16,32], index: 3, kind: output, shape index: {}]
  %s4 = sld [smem:[#allocation0]]
  $region45: #{tpu_custom_call.1} parent=0
    _
  %s6 = ssub.s32 1, %s4
  %s7 = scalar_select 0, %s6, %s4
  $region1: #{tpu_custom_call.1} parent=0
    #allocation2 [shape = 'u8[262144]{0}', space=vmem, size = 0x40000, scoped, tag = 'output window, operand 0']
    #allocation3 [shape = 's32[2]{0}', space=sflag, size = 0x8, scoped, tag = 'scoped memory for tpu_custom_call.1']
    %8 = vsyncpa [#allocation3], 0
    %s9 = scalar_lea.sflag [#allocation3], 1
    %10 = vsyncpa %s9, 0
    loop: start=0, step=1, limit=4
    $region2: #{tpu_custom_call.1} parent=1 // loop_pre_header
      _
    $region3: #{tpu_custom_call.1} parent=1 // loop_header
      %s12 = sphi 0, %s16
      %p13 = scmp.ge.s32.totalorder %s12, 4
      %s19 = sphi 0, %s31
      %s20 = sphi 0, %s27
      %s21 = sphi 0, %s19
      %s22 = sphi 0, %s20
      %s23 = sphi 0, %s21
      %s24 = sphi 0, %s22
      %s36 = sphi 0, %s38
      %s39 = sphi 0, %s36
      %s40 = sphi 0, %s39
      %s56 = sphi 0, %s40
      %s62 = sphi 0, %s64
      %s65 = sphi 0, %s62
      %s66 = sphi 0, %s65
      %s82 = sphi 0, %s66
      %s88 = sphi 0, %s90
      %s91 = sphi 0, %s88
      %s92 = sphi 0, %s91
      %s108 = sphi 0, %s92
      %s116 = sphi 0, %s118
      %s119 = sphi 0, %s116
      %s120 = sphi 0, %s119
      %s136 = sphi 0, %s120
    $region4: #{tpu_custom_call.1} parent=1 // loop_header_branch
      %15 = sbr.rel (%p13) target = $region8
    $region5: #{tpu_custom_call.1} parent=1 // loop_body
      %s17 = ssub.s32 %s12, 1
      %s18 = ssub.s32 %s12, 2
      %s25 = sadd.s32 1, %s20
      %p26 = scmp.ge.s32.totalorder %s25, 1
      %s27 = scalar_select %p26, 0, %s25
      %s28 = sadd.s32 1, %s19
      %s29 = scalar_select %p26, %s28, %s19
      %p30 = scmp.ge.s32.totalorder %s29, 2
      %s31 = scalar_select %p30, 0, %s29
      %s32 = ssub.s32 %s19, %s31
      %s33 = ssub.s32 %s20, %s27
      %s34 = sor.u32 %s32, %s33
      %p35 = scmp.eq.s32.totalorder %s34, 0
      %s37 = sadd.s32 %s36, 1
      %s38 = scalar_select %p35, %s36, %s37
      %p41 = pneg %p35
      %p42 = scmp.eq.s32.totalorder %s12, 1
      %p43 = por %p41, %p42
      %p44 = scmp.ne.s32.totalorder %s36, %s39
      %p45 = scmp.eq.s32.totalorder %s12, 0
      %p46 = por %p44, %p45
      %p47 = scmp.ne.s32.totalorder %s36, %s39
      %p48 = scmp.eq.s32.totalorder %s17, 1
      %p49 = por %p47, %p48
      %p50 = scmp.ne.s32.totalorder %s39, %s40
      %p51 = scmp.eq.s32.totalorder %s17, 0
      %p52 = por %p50, %p51
      %p53 = scmp.ne.s32.totalorder %s39, %s40
      %p54 = scmp.eq.s32.totalorder %s18, 1
      %p55 = por %p53, %p54
      %p57 = scmp.ne.s32.totalorder %s40, %s56
      %p58 = scmp.eq.s32.totalorder %s18, 0
      %p59 = por %p57, %p58
      %s60 = ssub.s32 %s20, %s27
      %p61 = scmp.eq.s32.totalorder %s60, 0
      %s63 = sadd.s32 %s62, 1
      %s64 = scalar_select %p61, %s62, %s63
      %p67 = pneg %p61
      %p68 = scmp.eq.s32.totalorder %s12, 1
      %p69 = por %p67, %p68
      %p70 = scmp.ne.s32.totalorder %s62, %s65
      %p71 = scmp.eq.s32.totalorder %s12, 0
      %p72 = por %p70, %p71
      %p73 = scmp.ne.s32.totalorder %s62, %s65
      %p74 = scmp.eq.s32.totalorder %s17, 1
      %p75 = por %p73, %p74
      %p76 = scmp.ne.s32.totalorder %s65, %s66
      %p77 = scmp.eq.s32.totalorder %s17, 0
      %p78 = por %p76, %p77
      %p79 = scmp.ne.s32.totalorder %s65, %s66
      %p80 = scmp.eq.s32.totalorder %s18, 1
      %p81 = por %p79, %p80
      %p83 = scmp.ne.s32.totalorder %s66, %s82
      %p84 = scmp.eq.s32.totalorder %s18, 0
      %p85 = por %p83, %p84
      %s86 = ssub.s32 %s20, %s27
      %p87 = scmp.eq.s32.totalorder %s86, 0
      %s89 = sadd.s32 %s88, 1
      %s90 = scalar_select %p87, %s88, %s89
      %p93 = pneg %p87
      %p94 = scmp.eq.s32.totalorder %s12, 1
      %p95 = por %p93, %p94
      %p96 = scmp.ne.s32.totalorder %s88, %s91
      %p97 = scmp.eq.s32.totalorder %s12, 0
      %p98 = por %p96, %p97
      %p99 = scmp.ne.s32.totalorder %s88, %s91
      %p100 = scmp.eq.s32.totalorder %s17, 1
      %p101 = por %p99, %p100
      %p102 = scmp.ne.s32.totalorder %s91, %s92
      %p103 = scmp.eq.s32.totalorder %s17, 0
      %p104 = por %p102, %p103
      %p105 = scmp.ne.s32.totalorder %s91, %s92
      %p106 = scmp.eq.s32.totalorder %s18, 1
      %p107 = por %p105, %p106
      %p109 = scmp.ne.s32.totalorder %s92, %s108
      %p110 = scmp.eq.s32.totalorder %s18, 0
      %p111 = por %p109, %p110
      %s112 = ssub.s32 %s19, %s31
      %s113 = ssub.s32 %s20, %s27
      %s114 = sor.u32 %s112, %s113
      %p115 = scmp.eq.s32.totalorder %s114, 0
      %s117 = sadd.s32 %s116, 1
      %s118 = scalar_select %p115, %s116, %s117
      %p121 = pneg %p115
      %p122 = scmp.eq.s32.totalorder %s12, 1
      %p123 = por %p121, %p122
      %p124 = scmp.ne.s32.totalorder %s116, %s119
      %p125 = scmp.eq.s32.totalorder %s12, 0
      %p126 = por %p124, %p125
      %p127 = scmp.ne.s32.totalorder %s116, %s119
      %p128 = scmp.eq.s32.totalorder %s17, 1
      %p129 = por %p127, %p128
      %p130 = scmp.ne.s32.totalorder %s119, %s120
      %p131 = scmp.eq.s32.totalorder %s17, 0
      %p132 = por %p130, %p131
      %p133 = scmp.ne.s32.totalorder %s119, %s120
      %p134 = scmp.eq.s32.totalorder %s18, 1
      %p135 = por %p133, %p134
      %p137 = scmp.ne.s32.totalorder %s120, %s136
      %p138 = scmp.eq.s32.totalorder %s18, 0
      %p139 = por %p137, %p138
      %p140 = scmp.le.s32.totalorder 1, %s12
      %p141 = scmp.lt.s32.totalorder %s12, 3
      %p142 = pnand %p140, %p141
      %p143 = pneg %p142
      // Predicated region
      $region9: #{tpu_custom_call.1} parent=5 // pred_check
        _
      $region10: #{tpu_custom_call.1} parent=5 // pred_check_branch
        %145 = sbr.rel (%p142) target = $region12
      $region11: #{tpu_custom_call.1} parent=5 // pred_region
        %s146 = ssub.s32 %s12, 1
        // Predicated region
        $region13: #{tpu_custom_call.1} parent=11 // pred_check
          %p147 = pneg %p78
        $region14: #{tpu_custom_call.1} parent=11 // pred_check_branch
          %149 = sbr.rel (%p147) target = $region16
        $region15: #{tpu_custom_call.1} parent=11 // pred_region
          %p150 = scmp.lt.s32.totalorder %s22, 0
          %s151 = scalar_select %p150, %s22, 0
          %s152 = smul.addr %s151, 8
          %s153 = scalar_lea.vmem %s1, %s152
        $region16: #{tpu_custom_call.1} parent=11 // pred_fallthru
          _
        // Predicated region
        $region17: #{tpu_custom_call.1} parent=11 // pred_check
          %p154 = pneg %p104
        $region18: #{tpu_custom_call.1} parent=11 // pred_check_branch
          %156 = sbr.rel (%p154) target = $region20
        $region19: #{tpu_custom_call.1} parent=11 // pred_region
          %p157 = scmp.lt.s32.totalorder %s22, 0
          %s158 = scalar_select %p157, %s22, 0
          %s159 = scalar_lea.vmem %s2, %s158
        $region20: #{tpu_custom_call.1} parent=11 // pred_fallthru
          _
      $region12: #{tpu_custom_call.1} parent=5 // pred_fallthru
        _
      %p160 = scmp.lt.s32.totalorder %s12, 2
      // Predicated region
      $region21: #{tpu_custom_call.1} parent=5 // pred_check
        %p161 = pneg %p160
      $region22: #{tpu_custom_call.1} parent=5 // pred_check_branch
        %163 = sbr.rel (%p161) target = $region24
      $region23: #{tpu_custom_call.1} parent=5 // pred_region
        // Predicated region
        $region25: #{tpu_custom_call.1} parent=23 // pred_check
          %p164 = pneg %p46
        $region26: #{tpu_custom_call.1} parent=23 // pred_check_branch
          %166 = sbr.rel (%p164) target = $region28
        $region27: #{tpu_custom_call.1} parent=23 // pred_region
          %p167 = scmp.lt.s32.totalorder %s19, 1
          %s168 = scalar_select %p167, %s19, 1
          %p169 = scmp.lt.s32.totalorder %s20, 0
          %s170 = scalar_select %p169, %s20, 0
          %s171 = smul.addr %s168, 54
          %s172 = sadd.s32 %s170, %s171
          %s173 = smul.addr %s172, 8
          %s174 = scalar_lea.vmem %s0, %s173
        $region28: #{tpu_custom_call.1} parent=23 // pred_fallthru
          _
      $region24: #{tpu_custom_call.1} parent=5 // pred_fallthru
        _
      %p175 = scmp.le.s32.totalorder 1, %s12
      %p176 = scmp.lt.s32.totalorder %s12, 3
      %p177 = pnand %p175, %p176
      %p178 = pneg %p177
      // Predicated region
      $region29: #{tpu_custom_call.1} parent=5 // pred_check
        _
      $region30: #{tpu_custom_call.1} parent=5 // pred_check_branch
        %180 = sbr.rel (%p177) target = $region32
      $region31: #{tpu_custom_call.1} parent=5 // pred_region
        %s181 = ssub.s32 %s12, 1
        %p182 = scmp.lt.s32.totalorder %s21, 1
        %s183 = scalar_select %p182, %s21, 1
        %p184 = scmp.lt.s32.totalorder %s22, 0
        %s185 = scalar_select %p184, %s22, 0
        %s186 = smul.addr %s183, 54
        %s187 = sadd.s32 %s185, %s186
        %s188 = smul.addr %s187, 8
        %s189 = scalar_lea.vmem %s0, %s188
        %p190 = pneg %p52
        %p191 = pneg %p49
        %p192 = scmp.lt.s32.totalorder %s22, 0
        %s193 = scalar_select %p192, %s22, 0
        %s194 = smul.addr %s193, 8
        %s195 = scalar_lea.vmem %s1, %s194
        %p196 = pneg %p78
        %p197 = pneg %p75
        %p198 = scmp.lt.s32.totalorder %s22, 0
        %s199 = scalar_select %p198, %s22, 0
        %s200 = scalar_lea.vmem %s2, %s199
        %p201 = pneg %p104
        %p202 = pneg %p101
        %p203 = pneg %p132
        %p204 = pneg %p129
        %s205 = sand.u32 %s119, 1
        %s206 = scalar_lea.sflag [#allocation3], %s205
        %s207 = sand.u32 %s119, 1
        %s208 = smul.addr %s207, 256
        %s209 = scalar_lea.vmem [#allocation2], %s208
        %p210 = scmp.lt.s32.totalorder %s21, 1
        %s211 = scalar_select %p210, %s21, 1
        %p212 = scmp.lt.s32.totalorder %s22, 0
        %s213 = scalar_select %p212, %s22, 0
        %s214 = smul.addr %s211, 54
        %s215 = sadd.s32 %s213, %s214
        %s216 = smul.addr %s215, 8
        %s217 = scalar_lea.vmem %s0, %s216
        %p218 = scmp.lt.s32.totalorder %s22, 0
        %s219 = scalar_select %p218, %s22, 0
        %s220 = smul.addr %s219, 8
        %s221 = scalar_lea.vmem %s1, %s220
        %p222 = scmp.lt.s32.totalorder %s22, 0
        %s223 = scalar_select %p222, %s22, 0
        %s224 = scalar_lea.vmem %s2, %s223
        %v225 = vld [vmem:[%s217] sm:$0xff]
        %v226 = vld [vmem:[%s217 + $0x8] sm:$0xff]
        %v227 = vld [vmem:[%s217 + $0x10] sm:$0x3]
        %v228 = vld [vmem:[%s217 + $0x18] sm:$0xff]
        %v229 = vld [vmem:[%s217 + $0x20] sm:$0xff]
        %v230 = vld [vmem:[%s217 + $0x28] sm:$0x3]
        %v231 = vld [vmem:[%s217 + $0x30] sm:$0xff]
        %v232 = vld [vmem:[%s217 + $0x38] sm:$0xff]
        %v233 = vld [vmem:[%s217 + $0x40] sm:$0x3]
        %v234 = vld [vmem:[%s217 + $0x48] sm:$0xff]
        %v235 = vld [vmem:[%s217 + $0x50] sm:$0xff]
        %v236 = vld [vmem:[%s217 + $0x58] sm:$0x3]
        %v237 = vld [vmem:[%s217 + $0x60] sm:$0xff]
        %v238 = vld [vmem:[%s217 + $0x68] sm:$0xff]
        %v239 = vld [vmem:[%s217 + $0x70] sm:$0x3]
        %v240 = vld [vmem:[%s217 + $0x78] sm:$0xff]
        %v241 = vld [vmem:[%s217 + $0x80] sm:$0xff]
        %v242 = vld [vmem:[%s217 + $0x88] sm:$0x3]
        %v243 = vld [vmem:[%s217 + $0x90] sm:$0xff]
        %v244 = vld [vmem:[%s217 + $0x98] sm:$0xff]
        %v245 = vld [vmem:[%s217 + $0xa0] sm:$0x3]
        %v246 = vld [vmem:[%s217 + $0xa8] sm:$0xff]
        %v247 = vld [vmem:[%s217 + $0xb0] sm:$0xff]
        %v248 = vld [vmem:[%s217 + $0xb8] sm:$0x3]
        %v249 = vld [vmem:[%s217 + $0xc0] sm:$0xff]
        %v250 = vld [vmem:[%s217 + $0xc8] sm:$0xff]
        %v251 = vld [vmem:[%s217 + $0xd0] sm:$0x3]
        %v252 = vld [vmem:[%s217 + $0xd8] sm:$0xff]
        %v253 = vld [vmem:[%s217 + $0xe0] sm:$0xff]
        %v254 = vld [vmem:[%s217 + $0xe8] sm:$0x3]
        %v255 = vld [vmem:[%s217 + $0xf0] sm:$0xff]
        %v256 = vld [vmem:[%s217 + $0xf8] sm:$0xff]
        %v257 = vld [vmem:[%s217 + $0x100] sm:$0x3]
        %v258 = vld [vmem:[%s217 + $0x108] sm:$0xff]
        %v259 = vld [vmem:[%s217 + $0x110] sm:$0xff]
        %v260 = vld [vmem:[%s217 + $0x118] sm:$0x3]
        %v261 = vld [vmem:[%s217 + $0x120] sm:$0xff]
        %v262 = vld [vmem:[%s217 + $0x128] sm:$0xff]
        %v263 = vld [vmem:[%s217 + $0x130] sm:$0x3]
        %v264 = vld [vmem:[%s217 + $0x138] sm:$0xff]
        %v265 = vld [vmem:[%s217 + $0x140] sm:$0xff]
        %v266 = vld [vmem:[%s217 + $0x148] sm:$0x3]
        %v267 = vld [vmem:[%s217 + $0x150] sm:$0xff]
        %v268 = vld [vmem:[%s217 + $0x158] sm:$0xff]
        %v269 = vld [vmem:[%s217 + $0x160] sm:$0x3]
        %v270 = vld [vmem:[%s217 + $0x168] sm:$0xff]
        %v271 = vld [vmem:[%s217 + $0x170] sm:$0xff]
        %v272 = vld [vmem:[%s217 + $0x178] sm:$0x3]
        %v273 = vld [vmem:[%s217 + $0x180] sm:$0xff]
        %v274 = vld [vmem:[%s217 + $0x188] sm:$0xff]
        %v275 = vld [vmem:[%s217 + $0x190] sm:$0x3]
        %v276 = vld [vmem:[%s217 + $0x198] sm:$0xff]
        %v277 = vld [vmem:[%s217 + $0x1a0] sm:$0xff]
        %v278 = vld [vmem:[%s217 + $0x1a8] sm:$0x3]
        %v279 = vld [vmem:[%s224] sm:$0x1]
        %v281 = vlaneseq
        %v282 = vshrl.u32 %v281, 7
        %v283 = vsub.s32 0, %v282
        %v284 = vrot.slane %v279, %v283
        %v286 = vld [vmem:[%s221] sm:$0x1]
        %v287 = vlaneseq
        %v288 = vshrl.u32 %v287, 7
        %v289 = vsub.s32 0, %v288
        %v290 = vrot.slane %v286, %v289
        %v291 = vmul.f32 %v225, %v290
        %v292 = vmul.f32 %v226, %v290
        %v293 = vmul.f32 %v228, %v290
        %v294 = vmul.f32 %v229, %v290
        %v295 = vmul.f32 %v231, %v290
        %v296 = vmul.f32 %v232, %v290
        %v297 = vmul.f32 %v234, %v290
        %v298 = vmul.f32 %v235, %v290
        %v299 = vmul.f32 %v237, %v290
        %v300 = vmul.f32 %v238, %v290
        %v301 = vmul.f32 %v240, %v290
        %v302 = vmul.f32 %v241, %v290
        %v303 = vmul.f32 %v243, %v290
        %v304 = vmul.f32 %v244, %v290
        %v305 = vmul.f32 %v246, %v290
        %v306 = vmul.f32 %v247, %v290
        %v307 = vmul.f32 %v249, %v290
        %v308 = vmul.f32 %v250, %v290
        %v309 = vmul.f32 %v252, %v290
        %v310 = vmul.f32 %v253, %v290
        %v311 = vmul.f32 %v255, %v290
        %v312 = vmul.f32 %v256, %v290
        %v313 = vmul.f32 %v258, %v290
        %v314 = vmul.f32 %v259, %v290
        %v315 = vmul.f32 %v261, %v290
        %v316 = vmul.f32 %v262, %v290
        %v317 = vmul.f32 %v264, %v290
        %v318 = vmul.f32 %v265, %v290
        %v319 = vmul.f32 %v267, %v290
        %v320 = vmul.f32 %v268, %v290
        %v321 = vmul.f32 %v270, %v290
        %v322 = vmul.f32 %v271, %v290
        %v323 = vadd.f32 %v284, %v291
        %v324 = vadd.f32 %v284, %v292
        %v325 = vadd.f32 %v284, %v293
        %v326 = vadd.f32 %v284, %v294
        %v327 = vadd.f32 %v284, %v295
        %v328 = vadd.f32 %v284, %v296
        %v329 = vadd.f32 %v284, %v297
        %v330 = vadd.f32 %v284, %v298
        %v331 = vadd.f32 %v284, %v299
        %v332 = vadd.f32 %v284, %v300
        %v333 = vadd.f32 %v284, %v301
        %v334 = vadd.f32 %v284, %v302
        %v335 = vadd.f32 %v284, %v303
        %v336 = vadd.f32 %v284, %v304
        %v337 = vadd.f32 %v284, %v305
        %v338 = vadd.f32 %v284, %v306
        %v339 = vadd.f32 %v284, %v307
        %v340 = vadd.f32 %v284, %v308
        %v341 = vadd.f32 %v284, %v309
        %v342 = vadd.f32 %v284, %v310
        %v343 = vadd.f32 %v284, %v311
        %v344 = vadd.f32 %v284, %v312
        %v345 = vadd.f32 %v284, %v313
        %v346 = vadd.f32 %v284, %v314
        %v347 = vadd.f32 %v284, %v315
        %v348 = vadd.f32 %v284, %v316
        %v349 = vadd.f32 %v284, %v317
        %v350 = vadd.f32 %v284, %v318
        %v351 = vadd.f32 %v284, %v319
        %v352 = vadd.f32 %v284, %v320
        %v353 = vadd.f32 %v284, %v321
        %v354 = vadd.f32 %v284, %v322
        %v355 = vld [vmem:[%s221 + $0x1] sm:$0x1]
        %v356 = vlaneseq
        %v357 = vshrl.u32 %v356, 7
        %v358 = vsub.s32 0, %v357
        %v359 = vrot.slane %v355, %v358
        %v360 = vmul.f32 %v225, %v359
        %v361 = vmul.f32 %v226, %v359
        %v362 = vmul.f32 %v227, %v359
        %v363 = vmul.f32 %v228, %v359
        %v364 = vmul.f32 %v229, %v359
        %v365 = vmul.f32 %v230, %v359
        %v366 = vmul.f32 %v231, %v359
        %v367 = vmul.f32 %v232, %v359
        %v368 = vmul.f32 %v233, %v359
        %v369 = vmul.f32 %v234, %v359
        %v370 = vmul.f32 %v235, %v359
        %v371 = vmul.f32 %v236, %v359
        %v372 = vmul.f32 %v237, %v359
        %v373 = vmul.f32 %v238, %v359
        %v374 = vmul.f32 %v239, %v359
        %v375 = vmul.f32 %v240, %v359
        %v376 = vmul.f32 %v241, %v359
        %v377 = vmul.f32 %v242, %v359
        %v378 = vmul.f32 %v243, %v359
        %v379 = vmul.f32 %v244, %v359
        %v380 = vmul.f32 %v245, %v359
        %v381 = vmul.f32 %v246, %v359
        %v382 = vmul.f32 %v247, %v359
        %v383 = vmul.f32 %v248, %v359
        %v384 = vmul.f32 %v249, %v359
        %v385 = vmul.f32 %v250, %v359
        %v386 = vmul.f32 %v251, %v359
        %v387 = vmul.f32 %v252, %v359
        %v388 = vmul.f32 %v253, %v359
        %v389 = vmul.f32 %v254, %v359
        %v390 = vmul.f32 %v255, %v359
        %v391 = vmul.f32 %v256, %v359
        %v392 = vmul.f32 %v257, %v359
        %v393 = vmul.f32 %v258, %v359
        %v394 = vmul.f32 %v259, %v359
        %v395 = vmul.f32 %v260, %v359
        %v396 = vmul.f32 %v261, %v359
        %v397 = vmul.f32 %v262, %v359
        %v398 = vmul.f32 %v263, %v359
        %v399 = vmul.f32 %v264, %v359
        %v400 = vmul.f32 %v265, %v359
        %v401 = vmul.f32 %v266, %v359
        %v402 = vmul.f32 %v267, %v359
        %v403 = vmul.f32 %v268, %v359
        %v404 = vmul.f32 %v269, %v359
        %v405 = vmul.f32 %v270, %v359
        %v406 = vmul.f32 %v271, %v359
        %v407 = vmul.f32 %v272, %v359
        %vm456 = vcmask 1046528
        %v457 = vrot.slane %v360, 1
        %v458 = vrot.slane %v361, 1
        %v459 = vsel %vm456, %v457, %v458
        %v460 = vrot.slane %v362, 1
        %v461 = vsel %vm456, %v458, %v460
        %v462 = vrot.slane %v363, 1
        %v463 = vrot.slane %v364, 1
        %v464 = vsel %vm456, %v462, %v463
        %v465 = vrot.slane %v365, 1
        %v466 = vsel %vm456, %v463, %v465
        %v467 = vrot.slane %v366, 1
        %v468 = vrot.slane %v367, 1
        %v469 = vsel %vm456, %v467, %v468
        %v470 = vrot.slane %v368, 1
        %v471 = vsel %vm456, %v468, %v470
        %v472 = vrot.slane %v369, 1
        %v473 = vrot.slane %v370, 1
        %v474 = vsel %vm456, %v472, %v473
        %v475 = vrot.slane %v371, 1
        %v476 = vsel %vm456, %v473, %v475
        %v477 = vrot.slane %v372, 1
        %v478 = vrot.slane %v373, 1
        %v479 = vsel %vm456, %v477, %v478
        %v480 = vrot.slane %v374, 1
        %v481 = vsel %vm456, %v478, %v480
        %v482 = vrot.slane %v375, 1
        %v483 = vrot.slane %v376, 1
        %v484 = vsel %vm456, %v482, %v483
        %v485 = vrot.slane %v377, 1
        %v486 = vsel %vm456, %v483, %v485
        %v487 = vrot.slane %v378, 1
        %v488 = vrot.slane %v379, 1
        %v489 = vsel %vm456, %v487, %v488
        %v490 = vrot.slane %v380, 1
        %v491 = vsel %vm456, %v488, %v490
        %v492 = vrot.slane %v381, 1
        %v493 = vrot.slane %v382, 1
        %v494 = vsel %vm456, %v492, %v493
        %v495 = vrot.slane %v383, 1
        %v496 = vsel %vm456, %v493, %v495
        %v497 = vrot.slane %v384, 1
        %v498 = vrot.slane %v385, 1
        %v499 = vsel %vm456, %v497, %v498
        %v500 = vrot.slane %v386, 1
        %v501 = vsel %vm456, %v498, %v500
        %v502 = vrot.slane %v387, 1
        %v503 = vrot.slane %v388, 1
        %v504 = vsel %vm456, %v502, %v503
        %v505 = vrot.slane %v389, 1
        %v506 = vsel %vm456, %v503, %v505
        %v507 = vrot.slane %v390, 1
        %v508 = vrot.slane %v391, 1
        %v509 = vsel %vm456, %v507, %v508
        %v510 = vrot.slane %v392, 1
        %v511 = vsel %vm456, %v508, %v510
        %v512 = vrot.slane %v393, 1
        %v513 = vrot.slane %v394, 1
        %v514 = vsel %vm456, %v512, %v513
        %v515 = vrot.slane %v395, 1
        %v516 = vsel %vm456, %v513, %v515
        %v517 = vrot.slane %v396, 1
        %v518 = vrot.slane %v397, 1
        %v519 = vsel %vm456, %v517, %v518
        %v520 = vrot.slane %v398, 1
        %v521 = vsel %vm456, %v518, %v520
        %v522 = vrot.slane %v399, 1
        %v523 = vrot.slane %v400, 1
        %v524 = vsel %vm456, %v522, %v523
        %v525 = vrot.slane %v401, 1
        %v526 = vsel %vm456, %v523, %v525
        %v527 = vrot.slane %v402, 1
        %v528 = vrot.slane %v403, 1
        %v529 = vsel %vm456, %v527, %v528
        %v530 = vrot.slane %v404, 1
        %v531 = vsel %vm456, %v528, %v530
        %v532 = vrot.slane %v405, 1
        %v533 = vrot.slane %v406, 1
        %v534 = vsel %vm456, %v532, %v533
        %v535 = vrot.slane %v407, 1
        %v536 = vsel %vm456, %v533, %v535
        %v569 = vadd.f32 %v323, %v459
        %v570 = vadd.f32 %v324, %v461
        %v571 = vadd.f32 %v325, %v464
        %v572 = vadd.f32 %v326, %v466
        %v573 = vadd.f32 %v327, %v469
        %v574 = vadd.f32 %v328, %v471
        %v575 = vadd.f32 %v329, %v474
        %v576 = vadd.f32 %v330, %v476
        %v577 = vadd.f32 %v331, %v479
        %v578 = vadd.f32 %v332, %v481
        %v579 = vadd.f32 %v333, %v484
        %v580 = vadd.f32 %v334, %v486
        %v581 = vadd.f32 %v335, %v489
        %v582 = vadd.f32 %v336, %v491
        %v583 = vadd.f32 %v337, %v494
        %v584 = vadd.f32 %v338, %v496
        %v585 = vadd.f32 %v339, %v499
        %v586 = vadd.f32 %v340, %v501
        %v587 = vadd.f32 %v341, %v504
        %v588 = vadd.f32 %v342, %v506
        %v589 = vadd.f32 %v343, %v509
        %v590 = vadd.f32 %v344, %v511
        %v591 = vadd.f32 %v345, %v514
        %v592 = vadd.f32 %v346, %v516
        %v593 = vadd.f32 %v347, %v519
        %v594 = vadd.f32 %v348, %v521
        %v595 = vadd.f32 %v349, %v524
        %v596 = vadd.f32 %v350, %v526
        %v597 = vadd.f32 %v351, %v529
        %v598 = vadd.f32 %v352, %v531
        %v599 = vadd.f32 %v353, %v534
        %v600 = vadd.f32 %v354, %v536
        %v601 = vld [vmem:[%s221 + $0x2] sm:$0x1]
        %v602 = vlaneseq
        %v603 = vshrl.u32 %v602, 7
        %v604 = vsub.s32 0, %v603
        %v605 = vrot.slane %v601, %v604
        %v606 = vmul.f32 %v225, %v605
        %v607 = vmul.f32 %v226, %v605
        %v608 = vmul.f32 %v227, %v605
        %v609 = vmul.f32 %v228, %v605
        %v610 = vmul.f32 %v229, %v605
        %v611 = vmul.f32 %v230, %v605
        %v612 = vmul.f32 %v231, %v605
        %v613 = vmul.f32 %v232, %v605
        %v614 = vmul.f32 %v233, %v605
        %v615 = vmul.f32 %v234, %v605
        %v616 = vmul.f32 %v235, %v605
        %v617 = vmul.f32 %v236, %v605
        %v618 = vmul.f32 %v237, %v605
        %v619 = vmul.f32 %v238, %v605
        %v620 = vmul.f32 %v239, %v605
        %v621 = vmul.f32 %v240, %v605
        %v622 = vmul.f32 %v241, %v605
        %v623 = vmul.f32 %v242, %v605
        %v624 = vmul.f32 %v243, %v605
        %v625 = vmul.f32 %v244, %v605
        %v626 = vmul.f32 %v245, %v605
        %v627 = vmul.f32 %v246, %v605
        %v628 = vmul.f32 %v247, %v605
        %v629 = vmul.f32 %v248, %v605
        %v630 = vmul.f32 %v249, %v605
        %v631 = vmul.f32 %v250, %v605
        %v632 = vmul.f32 %v251, %v605
        %v633 = vmul.f32 %v252, %v605
        %v634 = vmul.f32 %v253, %v605
        %v635 = vmul.f32 %v254, %v605
        %v636 = vmul.f32 %v255, %v605
        %v637 = vmul.f32 %v256, %v605
        %v638 = vmul.f32 %v257, %v605
        %v639 = vmul.f32 %v258, %v605
        %v640 = vmul.f32 %v259, %v605
        %v641 = vmul.f32 %v260, %v605
        %v642 = vmul.f32 %v261, %v605
        %v643 = vmul.f32 %v262, %v605
        %v644 = vmul.f32 %v263, %v605
        %v645 = vmul.f32 %v264, %v605
        %v646 = vmul.f32 %v265, %v605
        %v647 = vmul.f32 %v266, %v605
        %v648 = vmul.f32 %v267, %v605
        %v649 = vmul.f32 %v268, %v605
        %v650 = vmul.f32 %v269, %v605
        %v651 = vmul.f32 %v270, %v605
        %v652 = vmul.f32 %v271, %v605
        %v653 = vmul.f32 %v272, %v605
        %vm702 = vcmask 1045504
        %v703 = vrot.slane %v606, 2
        %v704 = vrot.slane %v607, 2
        %v705 = vsel %vm702, %v703, %v704
        %v706 = vrot.slane %v608, 2
        %v707 = vsel %vm702, %v704, %v706
        %v708 = vrot.slane %v609, 2
        %v709 = vrot.slane %v610, 2
        %v710 = vsel %vm702, %v708, %v709
        %v711 = vrot.slane %v611, 2
        %v712 = vsel %vm702, %v709, %v711
        %v713 = vrot.slane %v612, 2
        %v714 = vrot.slane %v613, 2
        %v715 = vsel %vm702, %v713, %v714
        %v716 = vrot.slane %v614, 2
        %v717 = vsel %vm702, %v714, %v716
        %v718 = vrot.slane %v615, 2
        %v719 = vrot.slane %v616, 2
        %v720 = vsel %vm702, %v718, %v719
        %v721 = vrot.slane %v617, 2
        %v722 = vsel %vm702, %v719, %v721
        %v723 = vrot.slane %v618, 2
        %v724 = vrot.slane %v619, 2
        %v725 = vsel %vm702, %v723, %v724
        %v726 = vrot.slane %v620, 2
        %v727 = vsel %vm702, %v724, %v726
        %v728 = vrot.slane %v621, 2
        %v729 = vrot.slane %v622, 2
        %v730 = vsel %vm702, %v728, %v729
        %v731 = vrot.slane %v623, 2
        %v732 = vsel %vm702, %v729, %v731
        %v733 = vrot.slane %v624, 2
        %v734 = vrot.slane %v625, 2
        %v735 = vsel %vm702, %v733, %v734
        %v736 = vrot.slane %v626, 2
        %v737 = vsel %vm702, %v734, %v736
        %v738 = vrot.slane %v627, 2
        %v739 = vrot.slane %v628, 2
        %v740 = vsel %vm702, %v738, %v739
        %v741 = vrot.slane %v629, 2
        %v742 = vsel %vm702, %v739, %v741
        %v743 = vrot.slane %v630, 2
        %v744 = vrot.slane %v631, 2
        %v745 = vsel %vm702, %v743, %v744
        %v746 = vrot.slane %v632, 2
        %v747 = vsel %vm702, %v744, %v746
        %v748 = vrot.slane %v633, 2
        %v749 = vrot.slane %v634, 2
        %v750 = vsel %vm702, %v748, %v749
        %v751 = vrot.slane %v635, 2
        %v752 = vsel %vm702, %v749, %v751
        %v753 = vrot.slane %v636, 2
        %v754 = vrot.slane %v637, 2
        %v755 = vsel %vm702, %v753, %v754
        %v756 = vrot.slane %v638, 2
        %v757 = vsel %vm702, %v754, %v756
        %v758 = vrot.slane %v639, 2
        %v759 = vrot.slane %v640, 2
        %v760 = vsel %vm702, %v758, %v759
        %v761 = vrot.slane %v641, 2
        %v762 = vsel %vm702, %v759, %v761
        %v763 = vrot.slane %v642, 2
        %v764 = vrot.slane %v643, 2
        %v765 = vsel %vm702, %v763, %v764
        %v766 = vrot.slane %v644, 2
        %v767 = vsel %vm702, %v764, %v766
        %v768 = vrot.slane %v645, 2
        %v769 = vrot.slane %v646, 2
        %v770 = vsel %vm702, %v768, %v769
        %v771 = vrot.slane %v647, 2
        %v772 = vsel %vm702, %v769, %v771
        %v773 = vrot.slane %v648, 2
        %v774 = vrot.slane %v649, 2
        %v775 = vsel %vm702, %v773, %v774
        %v776 = vrot.slane %v650, 2
        %v777 = vsel %vm702, %v774, %v776
        %v778 = vrot.slane %v651, 2
        %v779 = vrot.slane %v652, 2
        %v780 = vsel %vm702, %v778, %v779
        %v781 = vrot.slane %v653, 2
        %v782 = vsel %vm702, %v779, %v781
        %v815 = vadd.f32 %v569, %v705
        %v816 = vadd.f32 %v570, %v707
        %v817 = vadd.f32 %v571, %v710
        %v818 = vadd.f32 %v572, %v712
        %v819 = vadd.f32 %v573, %v715
        %v820 = vadd.f32 %v574, %v717
        %v821 = vadd.f32 %v575, %v720
        %v822 = vadd.f32 %v576, %v722
        %v823 = vadd.f32 %v577, %v725
        %v824 = vadd.f32 %v578, %v727
        %v825 = vadd.f32 %v579, %v730
        %v826 = vadd.f32 %v580, %v732
        %v827 = vadd.f32 %v581, %v735
        %v828 = vadd.f32 %v582, %v737
        %v829 = vadd.f32 %v583, %v740
        %v830 = vadd.f32 %v584, %v742
        %v831 = vadd.f32 %v585, %v745
        %v832 = vadd.f32 %v586, %v747
        %v833 = vadd.f32 %v587, %v750
        %v834 = vadd.f32 %v588, %v752
        %v835 = vadd.f32 %v589, %v755
        %v836 = vadd.f32 %v590, %v757
        %v837 = vadd.f32 %v591, %v760
        %v838 = vadd.f32 %v592, %v762
        %v839 = vadd.f32 %v593, %v765
        %v840 = vadd.f32 %v594, %v767
        %v841 = vadd.f32 %v595, %v770
        %v842 = vadd.f32 %v596, %v772
        %v843 = vadd.f32 %v597, %v775
        %v844 = vadd.f32 %v598, %v777
        %v845 = vadd.f32 %v599, %v780
        %v846 = vadd.f32 %v600, %v782
        %v847 = vld [vmem:[%s221 + $0x3] sm:$0x1]
        %v848 = vlaneseq
        %v849 = vshrl.u32 %v848, 7
        %v850 = vsub.s32 0, %v849
        %v851 = vrot.slane %v847, %v850
        %v852 = vmul.f32 %v228, %v851
        %v853 = vmul.f32 %v229, %v851
        %v854 = vmul.f32 %v231, %v851
        %v855 = vmul.f32 %v232, %v851
        %v856 = vmul.f32 %v234, %v851
        %v857 = vmul.f32 %v235, %v851
        %v858 = vmul.f32 %v237, %v851
        %v859 = vmul.f32 %v238, %v851
        %v860 = vmul.f32 %v240, %v851
        %v861 = vmul.f32 %v241, %v851
        %v862 = vmul.f32 %v243, %v851
        %v863 = vmul.f32 %v244, %v851
        %v864 = vmul.f32 %v246, %v851
        %v865 = vmul.f32 %v247, %v851
        %v866 = vmul.f32 %v249, %v851
        %v867 = vmul.f32 %v250, %v851
        %v868 = vmul.f32 %v252, %v851
        %v869 = vmul.f32 %v253, %v851
        %v870 = vmul.f32 %v255, %v851
        %v871 = vmul.f32 %v256, %v851
        %v872 = vmul.f32 %v258, %v851
        %v873 = vmul.f32 %v259, %v851
        %v874 = vmul.f32 %v261, %v851
        %v875 = vmul.f32 %v262, %v851
        %v876 = vmul.f32 %v264, %v851
        %v877 = vmul.f32 %v265, %v851
        %v878 = vmul.f32 %v267, %v851
        %v879 = vmul.f32 %v268, %v851
        %v880 = vmul.f32 %v270, %v851
        %v881 = vmul.f32 %v271, %v851
        %v882 = vmul.f32 %v273, %v851
        %v883 = vmul.f32 %v274, %v851
        %v884 = vadd.f32 %v815, %v852
        %v885 = vadd.f32 %v816, %v853
        %v886 = vadd.f32 %v817, %v854
        %v887 = vadd.f32 %v818, %v855
        %v888 = vadd.f32 %v819, %v856
        %v889 = vadd.f32 %v820, %v857
        %v890 = vadd.f32 %v821, %v858
        %v891 = vadd.f32 %v822, %v859
        %v892 = vadd.f32 %v823, %v860
        %v893 = vadd.f32 %v824, %v861
        %v894 = vadd.f32 %v825, %v862
        %v895 = vadd.f32 %v826, %v863
        %v896 = vadd.f32 %v827, %v864
        %v897 = vadd.f32 %v828, %v865
        %v898 = vadd.f32 %v829, %v866
        %v899 = vadd.f32 %v830, %v867
        %v900 = vadd.f32 %v831, %v868
        %v901 = vadd.f32 %v832, %v869
        %v902 = vadd.f32 %v833, %v870
        %v903 = vadd.f32 %v834, %v871
        %v904 = vadd.f32 %v835, %v872
        %v905 = vadd.f32 %v836, %v873
        %v906 = vadd.f32 %v837, %v874
        %v907 = vadd.f32 %v838, %v875
        %v908 = vadd.f32 %v839, %v876
        %v909 = vadd.f32 %v840, %v877
        %v910 = vadd.f32 %v841, %v878
        %v911 = vadd.f32 %v842, %v879
        %v912 = vadd.f32 %v843, %v880
        %v913 = vadd.f32 %v844, %v881
        %v914 = vadd.f32 %v845, %v882
        %v915 = vadd.f32 %v846, %v883
        %v916 = vld [vmem:[%s221 + $0x4] sm:$0x1]
        %v917 = vlaneseq
        %v918 = vshrl.u32 %v917, 7
        %v919 = vsub.s32 0, %v918
        %v920 = vrot.slane %v916, %v919
        %v921 = vmul.f32 %v228, %v920
        %v922 = vmul.f32 %v229, %v920
        %v923 = vmul.f32 %v230, %v920
        %v924 = vmul.f32 %v231, %v920
        %v925 = vmul.f32 %v232, %v920
        %v926 = vmul.f32 %v233, %v920
        %v927 = vmul.f32 %v234, %v920
        %v928 = vmul.f32 %v235, %v920
        %v929 = vmul.f32 %v236, %v920
        %v930 = vmul.f32 %v237, %v920
        %v931 = vmul.f32 %v238, %v920
        %v932 = vmul.f32 %v239, %v920
        %v933 = vmul.f32 %v240, %v920
        %v934 = vmul.f32 %v241, %v920
        %v935 = vmul.f32 %v242, %v920
        %v936 = vmul.f32 %v243, %v920
        %v937 = vmul.f32 %v244, %v920
        %v938 = vmul.f32 %v245, %v920
        %v939 = vmul.f32 %v246, %v920
        %v940 = vmul.f32 %v247, %v920
        %v941 = vmul.f32 %v248, %v920
        %v942 = vmul.f32 %v249, %v920
        %v943 = vmul.f32 %v250, %v920
        %v944 = vmul.f32 %v251, %v920
        %v945 = vmul.f32 %v252, %v920
        %v946 = vmul.f32 %v253, %v920
        %v947 = vmul.f32 %v254, %v920
        %v948 = vmul.f32 %v255, %v920
        %v949 = vmul.f32 %v256, %v920
        %v950 = vmul.f32 %v257, %v920
        %v951 = vmul.f32 %v258, %v920
        %v952 = vmul.f32 %v259, %v920
        %v953 = vmul.f32 %v260, %v920
        %v954 = vmul.f32 %v261, %v920
        %v955 = vmul.f32 %v262, %v920
        %v956 = vmul.f32 %v263, %v920
        %v957 = vmul.f32 %v264, %v920
        %v958 = vmul.f32 %v265, %v920
        %v959 = vmul.f32 %v266, %v920
        %v960 = vmul.f32 %v267, %v920
        %v961 = vmul.f32 %v268, %v920
        %v962 = vmul.f32 %v269, %v920
        %v963 = vmul.f32 %v270, %v920
        %v964 = vmul.f32 %v271, %v920
        %v965 = vmul.f32 %v272, %v920
        %v966 = vmul.f32 %v273, %v920
        %v967 = vmul.f32 %v274, %v920
        %v968 = vmul.f32 %v275, %v920
        %v1017 = vrot.slane %v921, 1
        %v1018 = vrot.slane %v922, 1
        %v1019 = vsel %vm456, %v1017, %v1018
        %v1020 = vrot.slane %v923, 1
        %v1021 = vsel %vm456, %v1018, %v1020
        %v1022 = vrot.slane %v924, 1
        %v1023 = vrot.slane %v925, 1
        %v1024 = vsel %vm456, %v1022, %v1023
        %v1025 = vrot.slane %v926, 1
        %v1026 = vsel %vm456, %v1023, %v1025
        %v1027 = vrot.slane %v927, 1
        %v1028 = vrot.slane %v928, 1
        %v1029 = vsel %vm456, %v1027, %v1028
        %v1030 = vrot.slane %v929, 1
        %v1031 = vsel %vm456, %v1028, %v1030
        %v1032 = vrot.slane %v930, 1
        %v1033 = vrot.slane %v931, 1
        %v1034 = vsel %vm456, %v1032, %v1033
        %v1035 = vrot.slane %v932, 1
        %v1036 = vsel %vm456, %v1033, %v1035
        %v1037 = vrot.slane %v933, 1
        %v1038 = vrot.slane %v934, 1
        %v1039 = vsel %vm456, %v1037, %v1038
        %v1040 = vrot.slane %v935, 1
        %v1041 = vsel %vm456, %v1038, %v1040
        %v1042 = vrot.slane %v936, 1
        %v1043 = vrot.slane %v937, 1
        %v1044 = vsel %vm456, %v1042, %v1043
        %v1045 = vrot.slane %v938, 1
        %v1046 = vsel %vm456, %v1043, %v1045
        %v1047 = vrot.slane %v939, 1
        %v1048 = vrot.slane %v940, 1
        %v1049 = vsel %vm456, %v1047, %v1048
        %v1050 = vrot.slane %v941, 1
        %v1051 = vsel %vm456, %v1048, %v1050
        %v1052 = vrot.slane %v942, 1
        %v1053 = vrot.slane %v943, 1
        %v1054 = vsel %vm456, %v1052, %v1053
        %v1055 = vrot.slane %v944, 1
        %v1056 = vsel %vm456, %v1053, %v1055
        %v1057 = vrot.slane %v945, 1
        %v1058 = vrot.slane %v946, 1
        %v1059 = vsel %vm456, %v1057, %v1058
        %v1060 = vrot.slane %v947, 1
        %v1061 = vsel %vm456, %v1058, %v1060
        %v1062 = vrot.slane %v948, 1
        %v1063 = vrot.slane %v949, 1
        %v1064 = vsel %vm456, %v1062, %v1063
        %v1065 = vrot.slane %v950, 1
        %v1066 = vsel %vm456, %v1063, %v1065
        %v1067 = vrot.slane %v951, 1
        %v1068 = vrot.slane %v952, 1
        %v1069 = vsel %vm456, %v1067, %v1068
        %v1070 = vrot.slane %v953, 1
        %v1071 = vsel %vm456, %v1068, %v1070
        %v1072 = vrot.slane %v954, 1
        %v1073 = vrot.slane %v955, 1
        %v1074 = vsel %vm456, %v1072, %v1073
        %v1075 = vrot.slane %v956, 1
        %v1076 = vsel %vm456, %v1073, %v1075
        %v1077 = vrot.slane %v957, 1
        %v1078 = vrot.slane %v958, 1
        %v1079 = vsel %vm456, %v1077, %v1078
        %v1080 = vrot.slane %v959, 1
        %v1081 = vsel %vm456, %v1078, %v1080
        %v1082 = vrot.slane %v960, 1
        %v1083 = vrot.slane %v961, 1
        %v1084 = vsel %vm456, %v1082, %v1083
        %v1085 = vrot.slane %v962, 1
        %v1086 = vsel %vm456, %v1083, %v1085
        %v1087 = vrot.slane %v963, 1
        %v1088 = vrot.slane %v964, 1
        %v1089 = vsel %vm456, %v1087, %v1088
        %v1090 = vrot.slane %v965, 1
        %v1091 = vsel %vm456, %v1088, %v1090
        %v1092 = vrot.slane %v966, 1
        %v1093 = vrot.slane %v967, 1
        %v1094 = vsel %vm456, %v1092, %v1093
        %v1095 = vrot.slane %v968, 1
        %v1096 = vsel %vm456, %v1093, %v1095
        %v1129 = vadd.f32 %v884, %v1019
        %v1130 = vadd.f32 %v885, %v1021
        %v1131 = vadd.f32 %v886, %v1024
        %v1132 = vadd.f32 %v887, %v1026
        %v1133 = vadd.f32 %v888, %v1029
        %v1134 = vadd.f32 %v889, %v1031
        %v1135 = vadd.f32 %v890, %v1034
        %v1136 = vadd.f32 %v891, %v1036
        %v1137 = vadd.f32 %v892, %v1039
        %v1138 = vadd.f32 %v893, %v1041
        %v1139 = vadd.f32 %v894, %v1044
        %v1140 = vadd.f32 %v895, %v1046
        %v1141 = vadd.f32 %v896, %v1049
        %v1142 = vadd.f32 %v897, %v1051
        %v1143 = vadd.f32 %v898, %v1054
        %v1144 = vadd.f32 %v899, %v1056
        %v1145 = vadd.f32 %v900, %v1059
        %v1146 = vadd.f32 %v901, %v1061
        %v1147 = vadd.f32 %v902, %v1064
        %v1148 = vadd.f32 %v903, %v1066
        %v1149 = vadd.f32 %v904, %v1069
        %v1150 = vadd.f32 %v905, %v1071
        %v1151 = vadd.f32 %v906, %v1074
        %v1152 = vadd.f32 %v907, %v1076
        %v1153 = vadd.f32 %v908, %v1079
        %v1154 = vadd.f32 %v909, %v1081
        %v1155 = vadd.f32 %v910, %v1084
        %v1156 = vadd.f32 %v911, %v1086
        %v1157 = vadd.f32 %v912, %v1089
        %v1158 = vadd.f32 %v913, %v1091
        %v1159 = vadd.f32 %v914, %v1094
        %v1160 = vadd.f32 %v915, %v1096
        %v1161 = vld [vmem:[%s221 + $0x5] sm:$0x1]
        %v1162 = vlaneseq
        %v1163 = vshrl.u32 %v1162, 7
        %v1164 = vsub.s32 0, %v1163
        %v1165 = vrot.slane %v1161, %v1164
        %v1166 = vmul.f32 %v228, %v1165
        %v1167 = vmul.f32 %v229, %v1165
        %v1168 = vmul.f32 %v230, %v1165
        %v1169 = vmul.f32 %v231, %v1165
        %v1170 = vmul.f32 %v232, %v1165
        %v1171 = vmul.f32 %v233, %v1165
        %v1172 = vmul.f32 %v234, %v1165
        %v1173 = vmul.f32 %v235, %v1165
        %v1174 = vmul.f32 %v236, %v1165
        %v1175 = vmul.f32 %v237, %v1165
        %v1176 = vmul.f32 %v238, %v1165
        %v1177 = vmul.f32 %v239, %v1165
        %v1178 = vmul.f32 %v240, %v1165
        %v1179 = vmul.f32 %v241, %v1165
        %v1180 = vmul.f32 %v242, %v1165
        %v1181 = vmul.f32 %v243, %v1165
        %v1182 = vmul.f32 %v244, %v1165
        %v1183 = vmul.f32 %v245, %v1165
        %v1184 = vmul.f32 %v246, %v1165
        %v1185 = vmul.f32 %v247, %v1165
        %v1186 = vmul.f32 %v248, %v1165
        %v1187 = vmul.f32 %v249, %v1165
        %v1188 = vmul.f32 %v250, %v1165
        %v1189 = vmul.f32 %v251, %v1165
        %v1190 = vmul.f32 %v252, %v1165
        %v1191 = vmul.f32 %v253, %v1165
        %v1192 = vmul.f32 %v254, %v1165
        %v1193 = vmul.f32 %v255, %v1165
        %v1194 = vmul.f32 %v256, %v1165
        %v1195 = vmul.f32 %v257, %v1165
        %v1196 = vmul.f32 %v258, %v1165
        %v1197 = vmul.f32 %v259, %v1165
        %v1198 = vmul.f32 %v260, %v1165
        %v1199 = vmul.f32 %v261, %v1165
        %v1200 = vmul.f32 %v262, %v1165
        %v1201 = vmul.f32 %v263, %v1165
        %v1202 = vmul.f32 %v264, %v1165
        %v1203 = vmul.f32 %v265, %v1165
        %v1204 = vmul.f32 %v266, %v1165
        %v1205 = vmul.f32 %v267, %v1165
        %v1206 = vmul.f32 %v268, %v1165
        %v1207 = vmul.f32 %v269, %v1165
        %v1208 = vmul.f32 %v270, %v1165
        %v1209 = vmul.f32 %v271, %v1165
        %v1210 = vmul.f32 %v272, %v1165
        %v1211 = vmul.f32 %v273, %v1165
        %v1212 = vmul.f32 %v274, %v1165
        %v1213 = vmul.f32 %v275, %v1165
        %v1262 = vrot.slane %v1166, 2
        %v1263 = vrot.slane %v1167, 2
        %v1264 = vsel %vm702, %v1262, %v1263
        %v1265 = vrot.slane %v1168, 2
        %v1266 = vsel %vm702, %v1263, %v1265
        %v1267 = vrot.slane %v1169, 2
        %v1268 = vrot.slane %v1170, 2
        %v1269 = vsel %vm702, %v1267, %v1268
        %v1270 = vrot.slane %v1171, 2
        %v1271 = vsel %vm702, %v1268, %v1270
        %v1272 = vrot.slane %v1172, 2
        %v1273 = vrot.slane %v1173, 2
        %v1274 = vsel %vm702, %v1272, %v1273
        %v1275 = vrot.slane %v1174, 2
        %v1276 = vsel %vm702, %v1273, %v1275
        %v1277 = vrot.slane %v1175, 2
        %v1278 = vrot.slane %v1176, 2
        %v1279 = vsel %vm702, %v1277, %v1278
        %v1280 = vrot.slane %v1177, 2
        %v1281 = vsel %vm702, %v1278, %v1280
        %v1282 = vrot.slane %v1178, 2
        %v1283 = vrot.slane %v1179, 2
        %v1284 = vsel %vm702, %v1282, %v1283
        %v1285 = vrot.slane %v1180, 2
        %v1286 = vsel %vm702, %v1283, %v1285
        %v1287 = vrot.slane %v1181, 2
        %v1288 = vrot.slane %v1182, 2
        %v1289 = vsel %vm702, %v1287, %v1288
        %v1290 = vrot.slane %v1183, 2
        %v1291 = vsel %vm702, %v1288, %v1290
        %v1292 = vrot.slane %v1184, 2
        %v1293 = vrot.slane %v1185, 2
        %v1294 = vsel %vm702, %v1292, %v1293
        %v1295 = vrot.slane %v1186, 2
        %v1296 = vsel %vm702, %v1293, %v1295
        %v1297 = vrot.slane %v1187, 2
        %v1298 = vrot.slane %v1188, 2
        %v1299 = vsel %vm702, %v1297, %v1298
        %v1300 = vrot.slane %v1189, 2
        %v1301 = vsel %vm702, %v1298, %v1300
        %v1302 = vrot.slane %v1190, 2
        %v1303 = vrot.slane %v1191, 2
        %v1304 = vsel %vm702, %v1302, %v1303
        %v1305 = vrot.slane %v1192, 2
        %v1306 = vsel %vm702, %v1303, %v1305
        %v1307 = vrot.slane %v1193, 2
        %v1308 = vrot.slane %v1194, 2
        %v1309 = vsel %vm702, %v1307, %v1308
        %v1310 = vrot.slane %v1195, 2
        %v1311 = vsel %vm702, %v1308, %v1310
        %v1312 = vrot.slane %v1196, 2
        %v1313 = vrot.slane %v1197, 2
        %v1314 = vsel %vm702, %v1312, %v1313
        %v1315 = vrot.slane %v1198, 2
        %v1316 = vsel %vm702, %v1313, %v1315
        %v1317 = vrot.slane %v1199, 2
        %v1318 = vrot.slane %v1200, 2
        %v1319 = vsel %vm702, %v1317, %v1318
        %v1320 = vrot.slane %v1201, 2
        %v1321 = vsel %vm702, %v1318, %v1320
        %v1322 = vrot.slane %v1202, 2
        %v1323 = vrot.slane %v1203, 2
        %v1324 = vsel %vm702, %v1322, %v1323
        %v1325 = vrot.slane %v1204, 2
        %v1326 = vsel %vm702, %v1323, %v1325
        %v1327 = vrot.slane %v1205, 2
        %v1328 = vrot.slane %v1206, 2
        %v1329 = vsel %vm702, %v1327, %v1328
        %v1330 = vrot.slane %v1207, 2
        %v1331 = vsel %vm702, %v1328, %v1330
        %v1332 = vrot.slane %v1208, 2
        %v1333 = vrot.slane %v1209, 2
        %v1334 = vsel %vm702, %v1332, %v1333
        %v1335 = vrot.slane %v1210, 2
        %v1336 = vsel %vm702, %v1333, %v1335
        %v1337 = vrot.slane %v1211, 2
        %v1338 = vrot.slane %v1212, 2
        %v1339 = vsel %vm702, %v1337, %v1338
        %v1340 = vrot.slane %v1213, 2
        %v1341 = vsel %vm702, %v1338, %v1340
        %v1374 = vadd.f32 %v1129, %v1264
        %v1375 = vadd.f32 %v1130, %v1266
        %v1376 = vadd.f32 %v1131, %v1269
        %v1377 = vadd.f32 %v1132, %v1271
        %v1378 = vadd.f32 %v1133, %v1274
        %v1379 = vadd.f32 %v1134, %v1276
        %v1380 = vadd.f32 %v1135, %v1279
        %v1381 = vadd.f32 %v1136, %v1281
        %v1382 = vadd.f32 %v1137, %v1284
        %v1383 = vadd.f32 %v1138, %v1286
        %v1384 = vadd.f32 %v1139, %v1289
        %v1385 = vadd.f32 %v1140, %v1291
        %v1386 = vadd.f32 %v1141, %v1294
        %v1387 = vadd.f32 %v1142, %v1296
        %v1388 = vadd.f32 %v1143, %v1299
        %v1389 = vadd.f32 %v1144, %v1301
        %v1390 = vadd.f32 %v1145, %v1304
        %v1391 = vadd.f32 %v1146, %v1306
        %v1392 = vadd.f32 %v1147, %v1309
        %v1393 = vadd.f32 %v1148, %v1311
        %v1394 = vadd.f32 %v1149, %v1314
        %v1395 = vadd.f32 %v1150, %v1316
        %v1396 = vadd.f32 %v1151, %v1319
        %v1397 = vadd.f32 %v1152, %v1321
        %v1398 = vadd.f32 %v1153, %v1324
        %v1399 = vadd.f32 %v1154, %v1326
        %v1400 = vadd.f32 %v1155, %v1329
        %v1401 = vadd.f32 %v1156, %v1331
        %v1402 = vadd.f32 %v1157, %v1334
        %v1403 = vadd.f32 %v1158, %v1336
        %v1404 = vadd.f32 %v1159, %v1339
        %v1405 = vadd.f32 %v1160, %v1341
        %v1406 = vld [vmem:[%s221 + $0x6] sm:$0x1]
        %v1407 = vlaneseq
        %v1408 = vshrl.u32 %v1407, 7
        %v1409 = vsub.s32 0, %v1408
        %v1410 = vrot.slane %v1406, %v1409
        %v1411 = vmul.f32 %v231, %v1410
        %v1412 = vmul.f32 %v232, %v1410
        %v1413 = vmul.f32 %v234, %v1410
        %v1414 = vmul.f32 %v235, %v1410
        %v1415 = vmul.f32 %v237, %v1410
        %v1416 = vmul.f32 %v238, %v1410
        %v1417 = vmul.f32 %v240, %v1410
        %v1418 = vmul.f32 %v241, %v1410
        %v1419 = vmul.f32 %v243, %v1410
        %v1420 = vmul.f32 %v244, %v1410
        %v1421 = vmul.f32 %v246, %v1410
        %v1422 = vmul.f32 %v247, %v1410
        %v1423 = vmul.f32 %v249, %v1410
        %v1424 = vmul.f32 %v250, %v1410
        %v1425 = vmul.f32 %v252, %v1410
        %v1426 = vmul.f32 %v253, %v1410
        %v1427 = vmul.f32 %v255, %v1410
        %v1428 = vmul.f32 %v256, %v1410
        %v1429 = vmul.f32 %v258, %v1410
        %v1430 = vmul.f32 %v259, %v1410
        %v1431 = vmul.f32 %v261, %v1410
        %v1432 = vmul.f32 %v262, %v1410
        %v1433 = vmul.f32 %v264, %v1410
        %v1434 = vmul.f32 %v265, %v1410
        %v1435 = vmul.f32 %v267, %v1410
        %v1436 = vmul.f32 %v268, %v1410
        %v1437 = vmul.f32 %v270, %v1410
        %v1438 = vmul.f32 %v271, %v1410
        %v1439 = vmul.f32 %v273, %v1410
        %v1440 = vmul.f32 %v274, %v1410
        %v1441 = vmul.f32 %v276, %v1410
        %v1442 = vmul.f32 %v277, %v1410
        %v1443 = vadd.f32 %v1374, %v1411
        %v1444 = vadd.f32 %v1375, %v1412
        %v1445 = vadd.f32 %v1376, %v1413
        %v1446 = vadd.f32 %v1377, %v1414
        %v1447 = vadd.f32 %v1378, %v1415
        %v1448 = vadd.f32 %v1379, %v1416
        %v1449 = vadd.f32 %v1380, %v1417
        %v1450 = vadd.f32 %v1381, %v1418
        %v1451 = vadd.f32 %v1382, %v1419
        %v1452 = vadd.f32 %v1383, %v1420
        %v1453 = vadd.f32 %v1384, %v1421
        %v1454 = vadd.f32 %v1385, %v1422
        %v1455 = vadd.f32 %v1386, %v1423
        %v1456 = vadd.f32 %v1387, %v1424
        %v1457 = vadd.f32 %v1388, %v1425
        %v1458 = vadd.f32 %v1389, %v1426
        %v1459 = vadd.f32 %v1390, %v1427
        %v1460 = vadd.f32 %v1391, %v1428
        %v1461 = vadd.f32 %v1392, %v1429
        %v1462 = vadd.f32 %v1393, %v1430
        %v1463 = vadd.f32 %v1394, %v1431
        %v1464 = vadd.f32 %v1395, %v1432
        %v1465 = vadd.f32 %v1396, %v1433
        %v1466 = vadd.f32 %v1397, %v1434
        %v1467 = vadd.f32 %v1398, %v1435
        %v1468 = vadd.f32 %v1399, %v1436
        %v1469 = vadd.f32 %v1400, %v1437
        %v1470 = vadd.f32 %v1401, %v1438
        %v1471 = vadd.f32 %v1402, %v1439
        %v1472 = vadd.f32 %v1403, %v1440
        %v1473 = vadd.f32 %v1404, %v1441
        %v1474 = vadd.f32 %v1405, %v1442
        %v1475 = vld [vmem:[%s221 + $0x7] sm:$0x1]
        %v1476 = vlaneseq
        %v1477 = vshrl.u32 %v1476, 7
        %v1478 = vsub.s32 0, %v1477
        %v1479 = vrot.slane %v1475, %v1478
        %v1480 = vmul.f32 %v231, %v1479
        %v1481 = vmul.f32 %v232, %v1479
        %v1482 = vmul.f32 %v233, %v1479
        %v1483 = vmul.f32 %v234, %v1479
        %v1484 = vmul.f32 %v235, %v1479
        %v1485 = vmul.f32 %v236, %v1479
        %v1486 = vmul.f32 %v237, %v1479
        %v1487 = vmul.f32 %v238, %v1479
        %v1488 = vmul.f32 %v239, %v1479
        %v1489 = vmul.f32 %v240, %v1479
        %v1490 = vmul.f32 %v241, %v1479
        %v1491 = vmul.f32 %v242, %v1479
        %v1492 = vmul.f32 %v243, %v1479
        %v1493 = vmul.f32 %v244, %v1479
        %v1494 = vmul.f32 %v245, %v1479
        %v1495 = vmul.f32 %v246, %v1479
        %v1496 = vmul.f32 %v247, %v1479
        %v1497 = vmul.f32 %v248, %v1479
        %v1498 = vmul.f32 %v249, %v1479
        %v1499 = vmul.f32 %v250, %v1479
        %v1500 = vmul.f32 %v251, %v1479
        %v1501 = vmul.f32 %v252, %v1479
        %v1502 = vmul.f32 %v253, %v1479
        %v1503 = vmul.f32 %v254, %v1479
        %v1504 = vmul.f32 %v255, %v1479
        %v1505 = vmul.f32 %v256, %v1479
        %v1506 = vmul.f32 %v257, %v1479
        %v1507 = vmul.f32 %v258, %v1479
        %v1508 = vmul.f32 %v259, %v1479
        %v1509 = vmul.f32 %v260, %v1479
        %v1510 = vmul.f32 %v261, %v1479
        %v1511 = vmul.f32 %v262, %v1479
        %v1512 = vmul.f32 %v263, %v1479
        %v1513 = vmul.f32 %v264, %v1479
        %v1514 = vmul.f32 %v265, %v1479
        %v1515 = vmul.f32 %v266, %v1479
        %v1516 = vmul.f32 %v267, %v1479
        %v1517 = vmul.f32 %v268, %v1479
        %v1518 = vmul.f32 %v269, %v1479
        %v1519 = vmul.f32 %v270, %v1479
        %v1520 = vmul.f32 %v271, %v1479
        %v1521 = vmul.f32 %v272, %v1479
        %v1522 = vmul.f32 %v273, %v1479
        %v1523 = vmul.f32 %v274, %v1479
        %v1524 = vmul.f32 %v275, %v1479
        %v1525 = vmul.f32 %v276, %v1479
        %v1526 = vmul.f32 %v277, %v1479
        %v1527 = vmul.f32 %v278, %v1479
        %v1576 = vrot.slane %v1480, 1
        %v1577 = vrot.slane %v1481, 1
        %v1578 = vsel %vm456, %v1576, %v1577
        %v1579 = vrot.slane %v1482, 1
        %v1580 = vsel %vm456, %v1577, %v1579
        %v1581 = vrot.slane %v1483, 1
        %v1582 = vrot.slane %v1484, 1
        %v1583 = vsel %vm456, %v1581, %v1582
        %v1584 = vrot.slane %v1485, 1
        %v1585 = vsel %vm456, %v1582, %v1584
        %v1586 = vrot.slane %v1486, 1
        %v1587 = vrot.slane %v1487, 1
        %v1588 = vsel %vm456, %v1586, %v1587
        %v1589 = vrot.slane %v1488, 1
        %v1590 = vsel %vm456, %v1587, %v1589
        %v1591 = vrot.slane %v1489, 1
        %v1592 = vrot.slane %v1490, 1
        %v1593 = vsel %vm456, %v1591, %v1592
        %v1594 = vrot.slane %v1491, 1
        %v1595 = vsel %vm456, %v1592, %v1594
        %v1596 = vrot.slane %v1492, 1
        %v1597 = vrot.slane %v1493, 1
        %v1598 = vsel %vm456, %v1596, %v1597
        %v1599 = vrot.slane %v1494, 1
        %v1600 = vsel %vm456, %v1597, %v1599
        %v1601 = vrot.slane %v1495, 1
        %v1602 = vrot.slane %v1496, 1
        %v1603 = vsel %vm456, %v1601, %v1602
        %v1604 = vrot.slane %v1497, 1
        %v1605 = vsel %vm456, %v1602, %v1604
        %v1606 = vrot.slane %v1498, 1
        %v1607 = vrot.slane %v1499, 1
        %v1608 = vsel %vm456, %v1606, %v1607
        %v1609 = vrot.slane %v1500, 1
        %v1610 = vsel %vm456, %v1607, %v1609
        %v1611 = vrot.slane %v1501, 1
        %v1612 = vrot.slane %v1502, 1
        %v1613 = vsel %vm456, %v1611, %v1612
        %v1614 = vrot.slane %v1503, 1
        %v1615 = vsel %vm456, %v1612, %v1614
        %v1616 = vrot.slane %v1504, 1
        %v1617 = vrot.slane %v1505, 1
        %v1618 = vsel %vm456, %v1616, %v1617
        %v1619 = vrot.slane %v1506, 1
        %v1620 = vsel %vm456, %v1617, %v1619
        %v1621 = vrot.slane %v1507, 1
        %v1622 = vrot.slane %v1508, 1
        %v1623 = vsel %vm456, %v1621, %v1622
        %v1624 = vrot.slane %v1509, 1
        %v1625 = vsel %vm456, %v1622, %v1624
        %v1626 = vrot.slane %v1510, 1
        %v1627 = vrot.slane %v1511, 1
        %v1628 = vsel %vm456, %v1626, %v1627
        %v1629 = vrot.slane %v1512, 1
        %v1630 = vsel %vm456, %v1627, %v1629
        %v1631 = vrot.slane %v1513, 1
        %v1632 = vrot.slane %v1514, 1
        %v1633 = vsel %vm456, %v1631, %v1632
        %v1634 = vrot.slane %v1515, 1
        %v1635 = vsel %vm456, %v1632, %v1634
        %v1636 = vrot.slane %v1516, 1
        %v1637 = vrot.slane %v1517, 1
        %v1638 = vsel %vm456, %v1636, %v1637
        %v1639 = vrot.slane %v1518, 1
        %v1640 = vsel %vm456, %v1637, %v1639
        %v1641 = vrot.slane %v1519, 1
        %v1642 = vrot.slane %v1520, 1
        %v1643 = vsel %vm456, %v1641, %v1642
        %v1644 = vrot.slane %v1521, 1
        %v1645 = vsel %vm456, %v1642, %v1644
        %v1646 = vrot.slane %v1522, 1
        %v1647 = vrot.slane %v1523, 1
        %v1648 = vsel %vm456, %v1646, %v1647
        %v1649 = vrot.slane %v1524, 1
        %v1650 = vsel %vm456, %v1647, %v1649
        %v1651 = vrot.slane %v1525, 1
        %v1652 = vrot.slane %v1526, 1
        %v1653 = vsel %vm456, %v1651, %v1652
        %v1654 = vrot.slane %v1527, 1
        %v1655 = vsel %vm456, %v1652, %v1654
        %v1688 = vadd.f32 %v1443, %v1578
        %v1689 = vadd.f32 %v1444, %v1580
        %v1690 = vadd.f32 %v1445, %v1583
        %v1691 = vadd.f32 %v1446, %v1585
        %v1692 = vadd.f32 %v1447, %v1588
        %v1693 = vadd.f32 %v1448, %v1590
        %v1694 = vadd.f32 %v1449, %v1593
        %v1695 = vadd.f32 %v1450, %v1595
        %v1696 = vadd.f32 %v1451, %v1598
        %v1697 = vadd.f32 %v1452, %v1600
        %v1698 = vadd.f32 %v1453, %v1603
        %v1699 = vadd.f32 %v1454, %v1605
        %v1700 = vadd.f32 %v1455, %v1608
        %v1701 = vadd.f32 %v1456, %v1610
        %v1702 = vadd.f32 %v1457, %v1613
        %v1703 = vadd.f32 %v1458, %v1615
        %v1704 = vadd.f32 %v1459, %v1618
        %v1705 = vadd.f32 %v1460, %v1620
        %v1706 = vadd.f32 %v1461, %v1623
        %v1707 = vadd.f32 %v1462, %v1625
        %v1708 = vadd.f32 %v1463, %v1628
        %v1709 = vadd.f32 %v1464, %v1630
        %v1710 = vadd.f32 %v1465, %v1633
        %v1711 = vadd.f32 %v1466, %v1635
        %v1712 = vadd.f32 %v1467, %v1638
        %v1713 = vadd.f32 %v1468, %v1640
        %v1714 = vadd.f32 %v1469, %v1643
        %v1715 = vadd.f32 %v1470, %v1645
        %v1716 = vadd.f32 %v1471, %v1648
        %v1717 = vadd.f32 %v1472, %v1650
        %v1718 = vadd.f32 %v1473, %v1653
        %v1719 = vadd.f32 %v1474, %v1655
        %v1720 = vld [vmem:[%s221 + $0x8] sm:$0x1]
        %v1721 = vlaneseq
        %v1722 = vshrl.u32 %v1721, 7
        %v1723 = vsub.s32 0, %v1722
        %v1724 = vrot.slane %v1720, %v1723
        %v1725 = vmul.f32 %v231, %v1724
        %v1726 = vmul.f32 %v232, %v1724
        %v1727 = vmul.f32 %v233, %v1724
        %v1728 = vmul.f32 %v234, %v1724
        %v1729 = vmul.f32 %v235, %v1724
        %v1730 = vmul.f32 %v236, %v1724
        %v1731 = vmul.f32 %v237, %v1724
        %v1732 = vmul.f32 %v238, %v1724
        %v1733 = vmul.f32 %v239, %v1724
        %v1734 = vmul.f32 %v240, %v1724
        %v1735 = vmul.f32 %v241, %v1724
        %v1736 = vmul.f32 %v242, %v1724
        %v1737 = vmul.f32 %v243, %v1724
        %v1738 = vmul.f32 %v244, %v1724
        %v1739 = vmul.f32 %v245, %v1724
        %v1740 = vmul.f32 %v246, %v1724
        %v1741 = vmul.f32 %v247, %v1724
        %v1742 = vmul.f32 %v248, %v1724
        %v1743 = vmul.f32 %v249, %v1724
        %v1744 = vmul.f32 %v250, %v1724
        %v1745 = vmul.f32 %v251, %v1724
        %v1746 = vmul.f32 %v252, %v1724
        %v1747 = vmul.f32 %v253, %v1724
        %v1748 = vmul.f32 %v254, %v1724
        %v1749 = vmul.f32 %v255, %v1724
        %v1750 = vmul.f32 %v256, %v1724
        %v1751 = vmul.f32 %v257, %v1724
        %v1752 = vmul.f32 %v258, %v1724
        %v1753 = vmul.f32 %v259, %v1724
        %v1754 = vmul.f32 %v260, %v1724
        %v1755 = vmul.f32 %v261, %v1724
        %v1756 = vmul.f32 %v262, %v1724
        %v1757 = vmul.f32 %v263, %v1724
        %v1758 = vmul.f32 %v264, %v1724
        %v1759 = vmul.f32 %v265, %v1724
        %v1760 = vmul.f32 %v266, %v1724
        %v1761 = vmul.f32 %v267, %v1724
        %v1762 = vmul.f32 %v268, %v1724
        %v1763 = vmul.f32 %v269, %v1724
        %v1764 = vmul.f32 %v270, %v1724
        %v1765 = vmul.f32 %v271, %v1724
        %v1766 = vmul.f32 %v272, %v1724
        %v1767 = vmul.f32 %v273, %v1724
        %v1768 = vmul.f32 %v274, %v1724
        %v1769 = vmul.f32 %v275, %v1724
        %v1770 = vmul.f32 %v276, %v1724
        %v1771 = vmul.f32 %v277, %v1724
        %v1772 = vmul.f32 %v278, %v1724
        %v1821 = vrot.slane %v1725, 2
        %v1822 = vrot.slane %v1726, 2
        %v1823 = vsel %vm702, %v1821, %v1822
        %v1824 = vrot.slane %v1727, 2
        %v1825 = vsel %vm702, %v1822, %v1824
        %v1826 = vrot.slane %v1728, 2
        %v1827 = vrot.slane %v1729, 2
        %v1828 = vsel %vm702, %v1826, %v1827
        %v1829 = vrot.slane %v1730, 2
        %v1830 = vsel %vm702, %v1827, %v1829
        %v1831 = vrot.slane %v1731, 2
        %v1832 = vrot.slane %v1732, 2
        %v1833 = vsel %vm702, %v1831, %v1832
        %v1834 = vrot.slane %v1733, 2
        %v1835 = vsel %vm702, %v1832, %v1834
        %v1836 = vrot.slane %v1734, 2
        %v1837 = vrot.slane %v1735, 2
        %v1838 = vsel %vm702, %v1836, %v1837
        %v1839 = vrot.slane %v1736, 2
        %v1840 = vsel %vm702, %v1837, %v1839
        %v1841 = vrot.slane %v1737, 2
        %v1842 = vrot.slane %v1738, 2
        %v1843 = vsel %vm702, %v1841, %v1842
        %v1844 = vrot.slane %v1739, 2
        %v1845 = vsel %vm702, %v1842, %v1844
        %v1846 = vrot.slane %v1740, 2
        %v1847 = vrot.slane %v1741, 2
        %v1848 = vsel %vm702, %v1846, %v1847
        %v1849 = vrot.slane %v1742, 2
        %v1850 = vsel %vm702, %v1847, %v1849
        %v1851 = vrot.slane %v1743, 2
        %v1852 = vrot.slane %v1744, 2
        %v1853 = vsel %vm702, %v1851, %v1852
        %v1854 = vrot.slane %v1745, 2
        %v1855 = vsel %vm702, %v1852, %v1854
        %v1856 = vrot.slane %v1746, 2
        %v1857 = vrot.slane %v1747, 2
        %v1858 = vsel %vm702, %v1856, %v1857
        %v1859 = vrot.slane %v1748, 2
        %v1860 = vsel %vm702, %v1857, %v1859
        %v1861 = vrot.slane %v1749, 2
        %v1862 = vrot.slane %v1750, 2
        %v1863 = vsel %vm702, %v1861, %v1862
        %v1864 = vrot.slane %v1751, 2
        %v1865 = vsel %vm702, %v1862, %v1864
        %v1866 = vrot.slane %v1752, 2
        %v1867 = vrot.slane %v1753, 2
        %v1868 = vsel %vm702, %v1866, %v1867
        %v1869 = vrot.slane %v1754, 2
        %v1870 = vsel %vm702, %v1867, %v1869
        %v1871 = vrot.slane %v1755, 2
        %v1872 = vrot.slane %v1756, 2
        %v1873 = vsel %vm702, %v1871, %v1872
        %v1874 = vrot.slane %v1757, 2
        %v1875 = vsel %vm702, %v1872, %v1874
        %v1876 = vrot.slane %v1758, 2
        %v1877 = vrot.slane %v1759, 2
        %v1878 = vsel %vm702, %v1876, %v1877
        %v1879 = vrot.slane %v1760, 2
        %v1880 = vsel %vm702, %v1877, %v1879
        %v1881 = vrot.slane %v1761, 2
        %v1882 = vrot.slane %v1762, 2
        %v1883 = vsel %vm702, %v1881, %v1882
        %v1884 = vrot.slane %v1763, 2
        %v1885 = vsel %vm702, %v1882, %v1884
        %v1886 = vrot.slane %v1764, 2
        %v1887 = vrot.slane %v1765, 2
        %v1888 = vsel %vm702, %v1886, %v1887
        %v1889 = vrot.slane %v1766, 2
        %v1890 = vsel %vm702, %v1887, %v1889
        %v1891 = vrot.slane %v1767, 2
        %v1892 = vrot.slane %v1768, 2
        %v1893 = vsel %vm702, %v1891, %v1892
        %v1894 = vrot.slane %v1769, 2
        %v1895 = vsel %vm702, %v1892, %v1894
        %v1896 = vrot.slane %v1770, 2
        %v1897 = vrot.slane %v1771, 2
        %v1898 = vsel %vm702, %v1896, %v1897
        %v1899 = vrot.slane %v1772, 2
        %v1900 = vsel %vm702, %v1897, %v1899
        %v1933 = vadd.f32 %v1688, %v1823
        %v1934 = vadd.f32 %v1689, %v1825
        %v1935 = vadd.f32 %v1690, %v1828
        %v1936 = vadd.f32 %v1691, %v1830
        %v1937 = vadd.f32 %v1692, %v1833
        %v1938 = vadd.f32 %v1693, %v1835
        %v1939 = vadd.f32 %v1694, %v1838
        %v1940 = vadd.f32 %v1695, %v1840
        %v1941 = vadd.f32 %v1696, %v1843
        %v1942 = vadd.f32 %v1697, %v1845
        %v1943 = vadd.f32 %v1698, %v1848
        %v1944 = vadd.f32 %v1699, %v1850
        %v1945 = vadd.f32 %v1700, %v1853
        %v1946 = vadd.f32 %v1701, %v1855
        %v1947 = vadd.f32 %v1702, %v1858
        %v1948 = vadd.f32 %v1703, %v1860
        %v1949 = vadd.f32 %v1704, %v1863
        %v1950 = vadd.f32 %v1705, %v1865
        %v1951 = vadd.f32 %v1706, %v1868
        %v1952 = vadd.f32 %v1707, %v1870
        %v1953 = vadd.f32 %v1708, %v1873
        %v1954 = vadd.f32 %v1709, %v1875
        %v1955 = vadd.f32 %v1710, %v1878
        %v1956 = vadd.f32 %v1711, %v1880
        %v1957 = vadd.f32 %v1712, %v1883
        %v1958 = vadd.f32 %v1713, %v1885
        %v1959 = vadd.f32 %v1714, %v1888
        %v1960 = vadd.f32 %v1715, %v1890
        %v1961 = vadd.f32 %v1716, %v1893
        %v1962 = vadd.f32 %v1717, %v1895
        %v1963 = vadd.f32 %v1718, %v1898
        %v1964 = vadd.f32 %v1719, %v1900
        %vm1965 = vcmask 261120
        %1966 = vst.msk [vmem:[%s209] sm:$0xff] %vm1965, %v1933
        %1967 = vst.msk [vmem:[%s209 + $0x8] sm:$0xff] %vm1965, %v1934
        %1968 = vst.msk [vmem:[%s209 + $0x10] sm:$0xff] %vm1965, %v1935
        %1969 = vst.msk [vmem:[%s209 + $0x18] sm:$0xff] %vm1965, %v1936
        %1970 = vst.msk [vmem:[%s209 + $0x20] sm:$0xff] %vm1965, %v1937
        %1971 = vst.msk [vmem:[%s209 + $0x28] sm:$0xff] %vm1965, %v1938
        %1972 = vst.msk [vmem:[%s209 + $0x30] sm:$0xff] %vm1965, %v1939
        %1973 = vst.msk [vmem:[%s209 + $0x38] sm:$0xff] %vm1965, %v1940
        %1974 = vst.msk [vmem:[%s209 + $0x40] sm:$0xff] %vm1965, %v1941
        %1975 = vst.msk [vmem:[%s209 + $0x48] sm:$0xff] %vm1965, %v1942
        %1976 = vst.msk [vmem:[%s209 + $0x50] sm:$0xff] %vm1965, %v1943
        %1977 = vst.msk [vmem:[%s209 + $0x58] sm:$0xff] %vm1965, %v1944
        %1978 = vst.msk [vmem:[%s209 + $0x60] sm:$0xff] %vm1965, %v1945
        %1979 = vst.msk [vmem:[%s209 + $0x68] sm:$0xff] %vm1965, %v1946
        %1980 = vst.msk [vmem:[%s209 + $0x70] sm:$0xff] %vm1965, %v1947
        %1981 = vst.msk [vmem:[%s209 + $0x78] sm:$0xff] %vm1965, %v1948
        %1982 = vst.msk [vmem:[%s209 + $0x80] sm:$0xff] %vm1965, %v1949
        %1983 = vst.msk [vmem:[%s209 + $0x88] sm:$0xff] %vm1965, %v1950
        %1984 = vst.msk [vmem:[%s209 + $0x90] sm:$0xff] %vm1965, %v1951
        %1985 = vst.msk [vmem:[%s209 + $0x98] sm:$0xff] %vm1965, %v1952
        %1986 = vst.msk [vmem:[%s209 + $0xa0] sm:$0xff] %vm1965, %v1953
        %1987 = vst.msk [vmem:[%s209 + $0xa8] sm:$0xff] %vm1965, %v1954
        %1988 = vst.msk [vmem:[%s209 + $0xb0] sm:$0xff] %vm1965, %v1955
        %1989 = vst.msk [vmem:[%s209 + $0xb8] sm:$0xff] %vm1965, %v1956
        %1990 = vst.msk [vmem:[%s209 + $0xc0] sm:$0xff] %vm1965, %v1957
        %1991 = vst.msk [vmem:[%s209 + $0xc8] sm:$0xff] %vm1965, %v1958
        %1992 = vst.msk [vmem:[%s209 + $0xd0] sm:$0xff] %vm1965, %v1959
        %1993 = vst.msk [vmem:[%s209 + $0xd8] sm:$0xff] %vm1965, %v1960
        %1994 = vst.msk [vmem:[%s209 + $0xe0] sm:$0xff] %vm1965, %v1961
        %1995 = vst.msk [vmem:[%s209 + $0xe8] sm:$0xff] %vm1965, %v1962
        %1996 = vst.msk [vmem:[%s209 + $0xf0] sm:$0xff] %vm1965, %v1963
        %1997 = vst.msk [vmem:[%s209 + $0xf8] sm:$0xff] %vm1965, %v1964
        %s1998 = sand.u32 %s119, 1
        %s1999 = scalar_lea.sflag [#allocation3], %s1998
        %s2000 = sand.u32 %s119, 1
        %s2001 = smul.addr %s2000, 256
        %s2002 = scalar_lea.vmem [#allocation2], %s2001
        // Predicated region
        $region33: #{tpu_custom_call.1} parent=31 // pred_check
          %p2003 = pneg %p129
        $region34: #{tpu_custom_call.1} parent=31 // pred_check_branch
          %2005 = sbr.rel (%p2003) target = $region36
        $region35: #{tpu_custom_call.1} parent=31 // pred_region
          %s2007 = ssub.s32 4096, 4096
          %2008 = vsyncadd %s1999, %s2007
          %s2009 = smul.addr %s21, 32
          %s2010 = sadd.s32 %s22, %s2009
          %s2011 = smul.addr %s2010, 128
          %s2012 = scalar_lea.hbm %s3, %s2011
          %s2013 = sshll.u32 %s2002, 4
          %s2014 = int_to_ptr.vmem [resolvable:$true] %s2013
          %2019 = dma.vmem_to_hbm [thread:$0]  %s2014, 4096, %s2012, %s1999, 128, 128, 8
        $region36: #{tpu_custom_call.1} parent=31 // pred_fallthru
          _
      $region32: #{tpu_custom_call.1} parent=5 // pred_fallthru
        _
      %p2020 = scmp.le.s32.totalorder 2, %s12
      // Predicated region
      $region37: #{tpu_custom_call.1} parent=5 // pred_check
        %p2021 = pneg %p2020
      $region38: #{tpu_custom_call.1} parent=5 // pred_check_branch
        %2023 = sbr.rel (%p2021) target = $region40
      $region39: #{tpu_custom_call.1} parent=5 // pred_region
        %s2024 = ssub.s32 %s12, 2
        // Predicated region
        $region41: #{tpu_custom_call.1} parent=39 // pred_check
          %p2025 = pneg %p135
        $region42: #{tpu_custom_call.1} parent=39 // pred_check_branch
          %2027 = sbr.rel (%p2025) target = $region44
        $region43: #{tpu_custom_call.1} parent=39 // pred_region
          %s2028 = sand.u32 %s120, 1
          %s2029 = scalar_lea.sflag [#allocation3], %s2028
          %s2030 = sand.u32 %s120, 1
          %s2031 = smul.addr %s2030, 256
          %s2032 = scalar_lea.vmem [#allocation2], %s2031
          %2033 = dma.done %s2029, 4096
        $region44: #{tpu_custom_call.1} parent=39 // pred_fallthru
          _
      $region40: #{tpu_custom_call.1} parent=5 // pred_fallthru
        _
    $region6: #{tpu_custom_call.1} parent=1 // loop_footer
      %s16 = sadd.s32 1, %s12
    $region7: #{tpu_custom_call.1} parent=1 // loop_footer_branch
      %11 = sbr.rel target = $region3
    $region8: #{tpu_custom_call.1} parent=1 // loop_exit
      _
    %2034 = vsyncpa [#allocation3], 1
    %s2035 = scalar_lea.sflag [#allocation3], 1
    %2036 = vsyncpa %s2035, 1

</llo_original>
